<compile_context>
chip_gen: v6e
topology: v6e:2x2x1
jax: 0.10.0
libtpu: 0.0.40
codegen_flags: <defaults>
</compile_context>

<pallas_src>
import jax
import jax.numpy as jnp
from jax.experimental import pallas as pl
from jax.experimental.pallas import tpu as pltpu

# ----------------------------------------------------------------------------
# Problem sizes (small, consistent with the module's forward)
# ----------------------------------------------------------------------------
B = 2              # batch
C_IN = 4           # input channels
H = W = 16         # spatial
C1, C2 = 8, 16     # conv channels
POS2 = 4 * 4       # conv2 output spatial positions
ENC = C2 * POS2    # = 256, flattened conv-encoder output ("enc_out")
LAT = 32           # core latent size
OUT = 8            # per-head output dim (out_[:, 0])
DEC_H = 128        # decoder hidden
IMG = C_IN * H * W  # 1024

_VMEM = pl.BlockSpec(memory_space=pltpu.MemorySpace.VMEM)


# ----------------------------------------------------------------------------
# Kernel 1: conv1 as im2col matmul + bias + ReLU
# ----------------------------------------------------------------------------
def _conv1_kernel(p_ref, w_ref, b_ref, o_ref):
    y = jnp.dot(p_ref[...], w_ref[...], preferred_element_type=jnp.float32)
    o_ref[...] = jnp.maximum(y + b_ref[...], 0.0).astype(o_ref.dtype)


def pallas_conv1(patches, wm, b2d):
    M, _ = patches.shape
    N = wm.shape[1]
    return pl.pallas_call(
        _conv1_kernel,
        out_shape=jax.ShapeDtypeStruct((M, N), jnp.float32),
        in_specs=[_VMEM, _VMEM, _VMEM],
        out_specs=_VMEM,
    )(patches, wm, b2d)


# ----------------------------------------------------------------------------
# Kernel 2: fused conv2 + 3x core-forward + NaN gate + 3x core-backward
#           + average + decoder MLP
# ----------------------------------------------------------------------------
def _fused_net_kernel(p2_ref, w2_ref, b2_ref, e3_ref,
                      wmu_ref, bmu_ref, wlv_ref, blv_ref,
                      wout_ref, bout_ref, ygt_ref,
                      bw1_ref, bb1_ref, bw2_ref, bb2_ref,
                      dw1_ref, db1_ref, dw2_ref, db2_ref,
                      oy_ref, ox_ref):
    f32 = jnp.float32

    # conv2 via block-diagonal weight: [B,1152] @ [1152,256] -> x_enc [B,256]
    x_enc = jnp.maximum(
        jnp.dot(p2_ref[...], w2_ref[...], preferred_element_type=f32)
        + b2_ref[...], 0.0)

    # Three cores, forward, fused into lane-dense matmuls (N = 3*LAT = 96).
    mu = jnp.dot(x_enc, wmu_ref[...], preferred_element_type=f32) + bmu_ref[...]
    lv = jnp.dot(x_enc, wlv_ref[...], preferred_element_type=f32) + blv_ref[...]
    z = mu + jnp.exp(0.5 * lv) * e3_ref[...]                      # [B, 96]
    y_pred = (jnp.dot(z, wout_ref[...], preferred_element_type=f32)
              + bout_ref[...])                                    # [B, 24] = y1_|y2_|y3_
    oy_ref[...] = y_pred.astype(oy_ref.dtype)

    # Global NaN gate (as in the reference): use predictions iff y has any NaN.
    yg = ygt_ref[...]
    isn = jnp.isnan(yg).astype(f32)
    g = jnp.max(jnp.max(isn, axis=1, keepdims=True), axis=0, keepdims=True)
    use_pred = jnp.broadcast_to(g, yg.shape) > 0.5
    y_sel = jnp.where(use_pred, y_pred, yg)                       # [B, 24]

    # Three cores, backward, fused: block-diag [24,96] then vstacked [96,256]
    # (the vstacked matmul computes y1_enc + y2_enc + y3_enc directly).
    hb = jnp.maximum(
        jnp.dot(y_sel, bw1_ref[...], preferred_element_type=f32)
        + bb1_ref[...], 0.0)                                      # [B, 96]
    y_enc = (jnp.dot(hb, bw2_ref[...], preferred_element_type=f32)
             + bb2_ref[...]) * (1.0 / 3.0)                        # [B, 256]

    # Conv-encoder backward (decoder MLP) -> flat image [B, 1024]
    hd = jnp.maximum(
        jnp.dot(y_enc, dw1_ref[...], preferred_element_type=f32)
        + db1_ref[...], 0.0)
    ox_ref[...] = (jnp.dot(hd, dw2_ref[...], preferred_element_type=f32)
                   + db2_ref[...]).astype(ox_ref.dtype)


def pallas_fused_net(p2f, fp, e3, yflat):
    Bn = p2f.shape[0]
    return pl.pallas_call(
        _fused_net_kernel,
        out_shape=(jax.ShapeDtypeStruct((Bn, 3 * OUT), jnp.float32),
                   jax.ShapeDtypeStruct((Bn, IMG), jnp.float32)),
        in_specs=[_VMEM] * 19,
        out_specs=(_VMEM, _VMEM),
    )(p2f, fp["w2bd"], fp["b2t"], e3,
      fp["wmu"], fp["bmu"], fp["wlv"], fp["blv"],
      fp["wout"], fp["bout"], yflat,
      fp["bw1"], fp["bb1"], fp["bw2"], fp["bb2"],
      fp["dec_w1"], fp["dec_b1"], fp["dec_w2"], fp["dec_b2"])


# ----------------------------------------------------------------------------
# Plain-JAX glue: im2col patch extraction (static slicing only)
# ----------------------------------------------------------------------------
def im2col(x, kh, kw, stride, pad):
    """x: [B, C, H, W] -> patches [B*Ho*Wo, C*kh*kw] (cols ordered (c, kh, kw))."""
    Bn, C, Hh, Ww = x.shape
    xp = jnp.pad(x, ((0, 0), (0, 0), (pad, pad), (pad, pad)))
    Ho = (Hh + 2 * pad - kh) // stride + 1
    Wo = (Ww + 2 * pad - kw) // stride + 1
    patches = []
    for di in range(kh):
        for dj in range(kw):
            patches.append(xp[:, :, di:di + stride * Ho:stride,
                               dj:dj + stride * Wo:stride])
    p = jnp.stack(patches, axis=2)            # [B, C, kh*kw, Ho, Wo]
    p = p.transpose(0, 3, 4, 1, 2)            # [B, Ho, Wo, C, kh*kw]
    return p.reshape(Bn * Ho * Wo, C * kh * kw), Ho, Wo


def block_diag3(a, b, c):
    r, k = a.shape
    z = jnp.zeros((r, k), a.dtype)
    return jnp.concatenate([
        jnp.concatenate([a, z, z], axis=1),
        jnp.concatenate([z, b, z], axis=1),
        jnp.concatenate([z, z, c], axis=1)], axis=0)


# ----------------------------------------------------------------------------
# Parameter construction (deterministic) + one-time head fusion
# ----------------------------------------------------------------------------
def _randn(key, shape, scale=0.1):
    return (scale * jax.random.normal(key, shape)).astype(jnp.float32)


def init_params(key):
    ks = jax.random.split(key, 32)
    it = iter(ks)
    params = {
        # CConvEnc forward (conv encoder)
        "conv1_w": _randn(next(it), (C1, C_IN, 3, 3)),
        "conv1_b": jnp.zeros((C1,), jnp.float32),
        "conv2_w": _randn(next(it), (C2, C1, 3, 3)),
        "conv2_b": jnp.zeros((C2,), jnp.float32),
        # CConvEnc backward (MLP decoder back to the image)
        "dec_w1": _randn(next(it), (ENC, DEC_H)),
        "dec_b1": jnp.zeros((DEC_H,), jnp.float32),
        "dec_w2": _randn(next(it), (DEC_H, IMG)),
        "dec_b2": jnp.zeros((IMG,), jnp.float32),
    }
    for c in ("core1", "core2", "core3"):
        params[c] = {
            "w_mu": _randn(next(it), (ENC, LAT)),
            "b_mu": jnp.zeros((LAT,), jnp.float32),
            "w_lv": _randn(next(it), (ENC, LAT)),
            "b_lv": jnp.zeros((LAT,), jnp.float32),
            "w_out": _randn(next(it), (LAT, OUT)),
            "b_out": jnp.zeros((OUT,), jnp.float32),
            # backward ('b') path: y -> enc
            "bw1": _randn(next(it), (OUT, LAT)),
            "bb1": jnp.zeros((LAT,), jnp.float32),
            "bw2": _randn(next(it), (LAT, ENC)),
            "bb2": jnp.zeros((ENC,), jnp.float32),
        }
    return params


def fuse_params(params):
    """Build lane-dense fused weight matrices once (wrapper side)."""
    c1, c2, c3 = params["core1"], params["core2"], params["core3"]
    w2m = params["conv2_w"].reshape(C2, C1 * 9).T          # [72, 16]
    return {
        # conv1
        "conv1_wm": params["conv1_w"].reshape(C1, C_IN * 9).T,     # [36, 8]
        "conv1_b": params["conv1_b"].reshape(1, C1),
        # conv2 as block-diagonal over the 16 spatial positions -> [1152, 256]
        "w2bd": jnp.kron(jnp.eye(POS2, dtype=jnp.float32), w2m),
        "b2t": jnp.tile(params["conv2_b"], POS2).reshape(1, ENC),
        # core forward heads, concatenated across cores (N = 96)
        "wmu": jnp.concatenate([c1["w_mu"], c2["w_mu"], c3["w_mu"]], axis=1),
        "bmu": jnp.concatenate([c1["b_mu"], c2["b_mu"], c3["b_mu"]]).reshape(1, 3 * LAT),
        "wlv": jnp.concatenate([c1["w_lv"], c2["w_lv"], c3["w_lv"]], axis=1),
        "blv": jnp.concatenate([c1["b_lv"], c2["b_lv"], c3["b_lv"]]).reshape(1, 3 * LAT),
        # output heads as one block-diagonal [96, 24]
        "wout": block_diag3(c1["w_out"], c2["w_out"], c3["w_out"]),
        "bout": jnp.concatenate([c1["b_out"], c2["b_out"], c3["b_out"]]).reshape(1, 3 * OUT),
        # backward path: block-diag first layer [24,96], vstacked second [96,256]
        "bw1": block_diag3(c1["bw1"], c2["bw1"], c3["bw1"]),
        "bb1": jnp.concatenate([c1["bb1"], c2["bb1"], c3["bb1"]]).reshape(1, 3 * LAT),
        "bw2": jnp.concatenate([c1["bw2"], c2["bw2"], c3["bw2"]], axis=0),
        "bb2": (c1["bb2"] + c2["bb2"] + c3["bb2"]).reshape(1, ENC),
        # decoder MLP
        "dec_w1": params["dec_w1"], "dec_b1": params["dec_b1"].reshape(1, DEC_H),
        "dec_w2": params["dec_w2"], "dec_b2": params["dec_b2"].reshape(1, IMG),
    }


# ----------------------------------------------------------------------------
# PepperNetMultiCore3.forward
# ----------------------------------------------------------------------------
@jax.jit
def pepper_net_multi_core3_forward(fp, x, y, e):
    # x: [B, C_IN, H, W], y: [B, 3, OUT], e: [B, LAT]
    Bn = x.shape[0]

    # conv1: im2col (XLA glue) + Pallas matmul kernel
    p1, Ho1, Wo1 = im2col(x, 3, 3, stride=2, pad=1)            # [B*8*8, 36]
    c1 = pallas_conv1(p1, fp["conv1_wm"], fp["conv1_b"])       # [128, 8]
    c1 = c1.reshape(Bn, Ho1, Wo1, C1).transpose(0, 3, 1, 2)    # NCHW [B,8,8,8]

    # conv2 patches, flattened per batch row for the in-kernel block-diag matmul
    p2, Ho2, Wo2 = im2col(c1, 3, 3, stride=2, pad=1)           # [B*16, 72]
    p2f = p2.reshape(Bn, Ho2 * Wo2 * C1 * 9)                   # [B, 1152]

    e3 = jnp.tile(e, (1, 3))                                   # [B, 96]
    yflat = y.reshape(Bn, 3 * OUT)                             # [B, 24]

    oy, ox = pallas_fused_net(p2f, fp, e3, yflat)              # [B,24], [B,1024]

    y_ = oy.reshape(Bn, 3, OUT)        # stack((y1_, y2_, y3_), dim=1)
    x_ = ox.reshape(Bn, C_IN, H, W)
    return x_, y_, None


# ----------------------------------------------------------------------------
# Main
# ----------------------------------------------------------------------------
if __name__ == "__main__":
    key = jax.random.PRNGKey(0)
    kp, kx, ky, ke = jax.random.split(key, 4)

    params = init_params(kp)
    fp = fuse_params(params)

    x = jax.random.normal(kx, (B, C_IN, H, W), dtype=jnp.float32)
    y = jax.random.normal(ky, (B, 3, OUT), dtype=jnp.float32)
    e = jax.random.normal(ke, (B, LAT), dtype=jnp.float32)

    x_, y_out, none_out = pepper_net_multi_core3_forward(fp, x, y, e)
    jax.block_until_ready((x_, y_out))

    assert x_.shape == (B, C_IN, H, W)
    assert y_out.shape == (B, 3, OUT)
    assert none_out is None
    print("KERNEL_OK")
</pallas_src>

<mosaic_0001>
module attributes {stable_mosaic.version = 11 : i64} {
  func.func @_conv1_kernel(%arg0: memref<128x36xf32, #tpu.memory_space<vmem>>, %arg1: memref<36x8xf32, #tpu.memory_space<vmem>>, %arg2: memref<1x8xf32, #tpu.memory_space<vmem>>, %arg3: memref<128x8xf32, #tpu.memory_space<vmem>>) attributes {dimension_semantics = [], scalar_prefetch = 0 : i64, scratch_operands = 0 : i64, tpu.core_type = #tpu.core_type<tc>} {
    %c0 = arith.constant 0 : index
    %c0_0 = arith.constant 0 : index
    %0 = vector.load %arg0[%c0, %c0_0] : memref<128x36xf32, #tpu.memory_space<vmem>>, vector<128x36xf32>
    %c0_1 = arith.constant 0 : index
    %c0_2 = arith.constant 0 : index
    %1 = vector.load %arg1[%c0_1, %c0_2] : memref<36x8xf32, #tpu.memory_space<vmem>>, vector<36x8xf32>
    %cst = arith.constant dense<0.000000e+00> : vector<128x8xf32>
    %2 = tpu.matmul %0, %1, %cst {dimension_numbers = #tpu.dot_dimension_numbers<[1], [0], [0], [1], [0, 0, 1, 1], [], []>} : vector<128x36xf32>, vector<36x8xf32>, vector<128x8xf32> -> vector<128x8xf32>
    %c0_3 = arith.constant 0 : index
    %c0_4 = arith.constant 0 : index
    %3 = vector.load %arg2[%c0_3, %c0_4] : memref<1x8xf32, #tpu.memory_space<vmem>>, vector<1x8xf32>
    %4 = vector.broadcast %3 : vector<1x8xf32> to vector<128x8xf32>
    %5 = arith.addf %2, %4 : vector<128x8xf32>
    %cst_5 = arith.constant 0.000000e+00 : f32
    %6 = vector.broadcast %cst_5 : f32 to vector<128x8xf32>
    %7 = arith.maximumf %5, %6 : vector<128x8xf32>
    %c0_6 = arith.constant 0 : index
    %c0_7 = arith.constant 0 : index
    %8 = vector.load %arg3[%c0_6, %c0_7] : memref<128x8xf32, #tpu.memory_space<vmem>>, vector<128x8xf32>
    tpu.vector_store %arg3[%c0_6, %c0_7], %7 {strides = array<i32>} : memref<128x8xf32, #tpu.memory_space<vmem>>, vector<128x8xf32>,
    return
  }
}

module attributes {stable_mosaic.version = 11 : i64} {
  func.func @_fused_net_kernel(%arg0: memref<2x1152xf32, #tpu.memory_space<vmem>>, %arg1: memref<1152x256xf32, #tpu.memory_space<vmem>>, %arg2: memref<1x256xf32, #tpu.memory_space<vmem>>, %arg3: memref<2x96xf32, #tpu.memory_space<vmem>>, %arg4: memref<256x96xf32, #tpu.memory_space<vmem>>, %arg5: memref<1x96xf32, #tpu.memory_space<vmem>>, %arg6: memref<256x96xf32, #tpu.memory_space<vmem>>, %arg7: memref<1x96xf32, #tpu.memory_space<vmem>>, %arg8: memref<96x24xf32, #tpu.memory_space<vmem>>, %arg9: memref<1x24xf32, #tpu.memory_space<vmem>>, %arg10: memref<2x24xf32, #tpu.memory_space<vmem>>, %arg11: memref<24x96xf32, #tpu.memory_space<vmem>>, %arg12: memref<1x96xf32, #tpu.memory_space<vmem>>, %arg13: memref<96x256xf32, #tpu.memory_space<vmem>>, %arg14: memref<1x256xf32, #tpu.memory_space<vmem>>, %arg15: memref<256x128xf32, #tpu.memory_space<vmem>>, %arg16: memref<1x128xf32, #tpu.memory_space<vmem>>, %arg17: memref<128x1024xf32, #tpu.memory_space<vmem>>, %arg18: memref<1x1024xf32, #tpu.memory_space<vmem>>, %arg19: memref<2x24xf32, #tpu.memory_space<vmem>>, %arg20: memref<2x1024xf32, #tpu.memory_space<vmem>>) attributes {dimension_semantics = [], scalar_prefetch = 0 : i64, scratch_operands = 0 : i64, tpu.core_type = #tpu.core_type<tc>} {
    %c0 = arith.constant 0 : index
    %c0_0 = arith.constant 0 : index
    %0 = vector.load %arg0[%c0, %c0_0] : memref<2x1152xf32, #tpu.memory_space<vmem>>, vector<2x1152xf32>
    %c0_1 = arith.constant 0 : index
    %c0_2 = arith.constant 0 : index
    %1 = vector.load %arg1[%c0_1, %c0_2] : memref<1152x256xf32, #tpu.memory_space<vmem>>, vector<1152x256xf32>
    %cst = arith.constant dense<0.000000e+00> : vector<2x256xf32>
    %2 = tpu.matmul %0, %1, %cst {dimension_numbers = #tpu.dot_dimension_numbers<[1], [0], [0], [1], [0, 0, 1, 1], [], []>} : vector<2x1152xf32>, vector<1152x256xf32>, vector<2x256xf32> -> vector<2x256xf32>
    %c0_3 = arith.constant 0 : index
    %c0_4 = arith.constant 0 : index
    %3 = vector.load %arg2[%c0_3, %c0_4] : memref<1x256xf32, #tpu.memory_space<vmem>>, vector<1x256xf32>
    %4 = vector.broadcast %3 : vector<1x256xf32> to vector<2x256xf32>
    %5 = arith.addf %2, %4 : vector<2x256xf32>
    %cst_5 = arith.constant 0.000000e+00 : f32
    %6 = vector.broadcast %cst_5 : f32 to vector<2x256xf32>
    %7 = arith.maximumf %5, %6 : vector<2x256xf32>
    %c0_6 = arith.constant 0 : index
    %c0_7 = arith.constant 0 : index
    %8 = vector.load %arg4[%c0_6, %c0_7] : memref<256x96xf32, #tpu.memory_space<vmem>>, vector<256x96xf32>
    %cst_8 = arith.constant dense<0.000000e+00> : vector<2x96xf32>
    %9 = tpu.matmul %7, %8, %cst_8 {dimension_numbers = #tpu.dot_dimension_numbers<[1], [0], [0], [1], [0, 0, 1, 1], [], []>} : vector<2x256xf32>, vector<256x96xf32>, vector<2x96xf32> -> vector<2x96xf32>
    %c0_9 = arith.constant 0 : index
    %c0_10 = arith.constant 0 : index
    %10 = vector.load %arg5[%c0_9, %c0_10] : memref<1x96xf32, #tpu.memory_space<vmem>>, vector<1x96xf32>
    %11 = vector.broadcast %10 : vector<1x96xf32> to vector<2x96xf32>
    %12 = arith.addf %9, %11 : vector<2x96xf32>
    %c0_11 = arith.constant 0 : index
    %c0_12 = arith.constant 0 : index
    %13 = vector.load %arg6[%c0_11, %c0_12] : memref<256x96xf32, #tpu.memory_space<vmem>>, vector<256x96xf32>
    %cst_13 = arith.constant dense<0.000000e+00> : vector<2x96xf32>
    %14 = tpu.matmul %7, %13, %cst_13 {dimension_numbers = #tpu.dot_dimension_numbers<[1], [0], [0], [1], [0, 0, 1, 1], [], []>} : vector<2x256xf32>, vector<256x96xf32>, vector<2x96xf32> -> vector<2x96xf32>
    %c0_14 = arith.constant 0 : index
    %c0_15 = arith.constant 0 : index
    %15 = vector.load %arg7[%c0_14, %c0_15] : memref<1x96xf32, #tpu.memory_space<vmem>>, vector<1x96xf32>
    %16 = vector.broadcast %15 : vector<1x96xf32> to vector<2x96xf32>
    %17 = arith.addf %14, %16 : vector<2x96xf32>
    %cst_16 = arith.constant 5.000000e-01 : f32
    %18 = vector.broadcast %cst_16 : f32 to vector<2x96xf32>
    %19 = arith.mulf %18, %17 : vector<2x96xf32>
    %20 = math.exp %19 : vector<2x96xf32>
    %c0_17 = arith.constant 0 : index
    %c0_18 = arith.constant 0 : index
    %21 = vector.load %arg3[%c0_17, %c0_18] : memref<2x96xf32, #tpu.memory_space<vmem>>, vector<2x96xf32>
    %22 = arith.mulf %20, %21 : vector<2x96xf32>
    %23 = arith.addf %12, %22 : vector<2x96xf32>
    %c0_19 = arith.constant 0 : index
    %c0_20 = arith.constant 0 : index
    %24 = vector.load %arg8[%c0_19, %c0_20] : memref<96x24xf32, #tpu.memory_space<vmem>>, vector<96x24xf32>
    %cst_21 = arith.constant dense<0.000000e+00> : vector<2x24xf32>
    %25 = tpu.matmul %23, %24, %cst_21 {dimension_numbers = #tpu.dot_dimension_numbers<[1], [0], [0], [1], [0, 0, 1, 1], [], []>} : vector<2x96xf32>, vector<96x24xf32>, vector<2x24xf32> -> vector<2x24xf32>
    %c0_22 = arith.constant 0 : index
    %c0_23 = arith.constant 0 : index
    %26 = vector.load %arg9[%c0_22, %c0_23] : memref<1x24xf32, #tpu.memory_space<vmem>>, vector<1x24xf32>
    %27 = vector.broadcast %26 : vector<1x24xf32> to vector<2x24xf32>
    %28 = arith.addf %25, %27 : vector<2x24xf32>
    %c0_24 = arith.constant 0 : index
    %c0_25 = arith.constant 0 : index
    %29 = vector.load %arg19[%c0_24, %c0_25] : memref<2x24xf32, #tpu.memory_space<vmem>>, vector<2x24xf32>
    tpu.vector_store %arg19[%c0_24, %c0_25], %28 {strides = array<i32>} : memref<2x24xf32, #tpu.memory_space<vmem>>, vector<2x24xf32>,
    %c0_26 = arith.constant 0 : index
    %c0_27 = arith.constant 0 : index
    %30 = vector.load %arg10[%c0_26, %c0_27] : memref<2x24xf32, #tpu.memory_space<vmem>>, vector<2x24xf32>
    %31 = arith.cmpf one, %30, %30 : vector<2x24xf32>
    %32 = arith.extui %31 : vector<2x24xi1> to vector<2x24xi32>
    %33 = arith.sitofp %32 : vector<2x24xi32> to vector<2x24xf32>
    %cst_28 = arith.constant dense<0xFF800000> : vector<2xf32>
    %34 = vector.multi_reduction <maximumf>, %33, %cst_28 [1] : vector<2x24xf32> to vector<2xf32>
    %35 = vector.shape_cast %34 : vector<2xf32> to vector<2x1xf32>
    %cst_29 = arith.constant dense<0xFF800000> : vector<1xf32>
    %36 = vector.multi_reduction <maximumf>, %35, %cst_29 [0] : vector<2x1xf32> to vector<1xf32>
    %37 = vector.shape_cast %36 : vector<1xf32> to vector<1x1xf32>
    %38 = vector.shape_cast %37 : vector<1x1xf32> to vector<1x1xf32>
    %39 = vector.broadcast %38 : vector<1x1xf32> to vector<2x24xf32>
    %cst_30 = arith.constant 5.000000e-01 : f32
    %40 = vector.broadcast %cst_30 : f32 to vector<2x24xf32>
    %41 = arith.cmpf ogt, %39, %40 : vector<2x24xf32>
    %42 = arith.select %41, %28, %30 : vector<2x24xi1>, vector<2x24xf32>
    %c0_31 = arith.constant 0 : index
    %c0_32 = arith.constant 0 : index
    %43 = vector.load %arg11[%c0_31, %c0_32] : memref<24x96xf32, #tpu.memory_space<vmem>>, vector<24x96xf32>
    %cst_33 = arith.constant dense<0.000000e+00> : vector<2x96xf32>
    %44 = tpu.matmul %42, %43, %cst_33 {dimension_numbers = #tpu.dot_dimension_numbers<[1], [0], [0], [1], [0, 0, 1, 1], [], []>} : vector<2x24xf32>, vector<24x96xf32>, vector<2x96xf32> -> vector<2x96xf32>
    %c0_34 = arith.constant 0 : index
    %c0_35 = arith.constant 0 : index
    %45 = vector.load %arg12[%c0_34, %c0_35] : memref<1x96xf32, #tpu.memory_space<vmem>>, vector<1x96xf32>
    %46 = vector.broadcast %45 : vector<1x96xf32> to vector<2x96xf32>
    %47 = arith.addf %44, %46 : vector<2x96xf32>
    %cst_36 = arith.constant 0.000000e+00 : f32
    %48 = vector.broadcast %cst_36 : f32 to vector<2x96xf32>
    %49 = arith.maximumf %47, %48 : vector<2x96xf32>
    %c0_37 = arith.constant 0 : index
    %c0_38 = arith.constant 0 : index
    %50 = vector.load %arg13[%c0_37, %c0_38] : memref<96x256xf32, #tpu.memory_space<vmem>>, vector<96x256xf32>
    %cst_39 = arith.constant dense<0.000000e+00> : vector<2x256xf32>
    %51 = tpu.matmul %49, %50, %cst_39 {dimension_numbers = #tpu.dot_dimension_numbers<[1], [0], [0], [1], [0, 0, 1, 1], [], []>} : vector<2x96xf32>, vector<96x256xf32>, vector<2x256xf32> -> vector<2x256xf32>
    %c0_40 = arith.constant 0 : index
    %c0_41 = arith.constant 0 : index
    %52 = vector.load %arg14[%c0_40, %c0_41] : memref<1x256xf32, #tpu.memory_space<vmem>>, vector<1x256xf32>
    %53 = vector.broadcast %52 : vector<1x256xf32> to vector<2x256xf32>
    %54 = arith.addf %51, %53 : vector<2x256xf32>
    %cst_42 = arith.constant 0.333333343 : f32
    %55 = vector.broadcast %cst_42 : f32 to vector<2x256xf32>
    %56 = arith.mulf %54, %55 : vector<2x256xf32>
    %c0_43 = arith.constant 0 : index
    %c0_44 = arith.constant 0 : index
    %57 = vector.load %arg15[%c0_43, %c0_44] : memref<256x128xf32, #tpu.memory_space<vmem>>, vector<256x128xf32>
    %cst_45 = arith.constant dense<0.000000e+00> : vector<2x128xf32>
    %58 = tpu.matmul %56, %57, %cst_45 {dimension_numbers = #tpu.dot_dimension_numbers<[1], [0], [0], [1], [0, 0, 1, 1], [], []>} : vector<2x256xf32>, vector<256x128xf32>, vector<2x128xf32> -> vector<2x128xf32>
    %c0_46 = arith.constant 0 : index
    %c0_47 = arith.constant 0 : index
    %59 = vector.load %arg16[%c0_46, %c0_47] : memref<1x128xf32, #tpu.memory_space<vmem>>, vector<1x128xf32>
    %60 = vector.broadcast %59 : vector<1x128xf32> to vector<2x128xf32>
    %61 = arith.addf %58, %60 : vector<2x128xf32>
    %cst_48 = arith.constant 0.000000e+00 : f32
    %62 = vector.broadcast %cst_48 : f32 to vector<2x128xf32>
    %63 = arith.maximumf %61, %62 : vector<2x128xf32>
    %c0_49 = arith.constant 0 : index
    %c0_50 = arith.constant 0 : index
    %64 = vector.load %arg17[%c0_49, %c0_50] : memref<128x1024xf32, #tpu.memory_space<vmem>>, vector<128x1024xf32>
    %cst_51 = arith.constant dense<0.000000e+00> : vector<2x1024xf32>
    %65 = tpu.matmul %63, %64, %cst_51 {dimension_numbers = #tpu.dot_dimension_numbers<[1], [0], [0], [1], [0, 0, 1, 1], [], []>} : vector<2x128xf32>, vector<128x1024xf32>, vector<2x1024xf32> -> vector<2x1024xf32>
    %c0_52 = arith.constant 0 : index
    %c0_53 = arith.constant 0 : index
    %66 = vector.load %arg18[%c0_52, %c0_53] : memref<1x1024xf32, #tpu.memory_space<vmem>>, vector<1x1024xf32>
    %67 = vector.broadcast %66 : vector<1x1024xf32> to vector<2x1024xf32>
    %68 = arith.addf %65, %67 : vector<2x1024xf32>
    %c0_54 = arith.constant 0 : index
    %c0_55 = arith.constant 0 : index
    %69 = vector.load %arg20[%c0_54, %c0_55] : memref<2x1024xf32, #tpu.memory_space<vmem>>, vector<2x1024xf32>
    tpu.vector_store %arg20[%c0_54, %c0_55], %68 {strides = array<i32>} : memref<2x1024xf32, #tpu.memory_space<vmem>>, vector<2x1024xf32>,
    return
  }
}

</mosaic_0001>

<llo_original>
// kernel: pepper_net_multi_core3_forward.2
$region0: #{pepper_net_multi_core3_forward.2}
  #allocation0 [shape = 'u32[]', space=smem, size = 0x4, offset = 0x4, fixed_abs, tag = 'smem constant byte address 0x4 - core index']
  #allocation1 [shape = 'u32[144,128]{1,0:T(1,128)}', space=vmem, size = 0x12000, scoped, tag = 'internal scratch']
  %s0 = inlined_call_operand.vmem [shape: f32[128,36], index: 0, kind: input, shape index: {}]
  %s1 = inlined_call_operand.vmem [shape: f32[36,8], index: 1, kind: input, shape index: {}]
  %s2 = inlined_call_operand.vmem [shape: f32[1,8], index: 2, kind: input, shape index: {}]
  %s3 = inlined_call_operand.vmem [shape: f32[128,8], index: 3, kind: output, shape index: {}]
  %s4 = sld [smem:[#allocation0]]
  $region22: #{pepper_net_multi_core3_forward.2} parent=0
    _
  %s6 = ssub.s32 1, %s4
  %s7 = scalar_select 0, %s6, %s4
  // Predicated region
  $region2: #{pepper_net_multi_core3_forward.2} parent=0 // pred_check
    _
  $region3: #{pepper_net_multi_core3_forward.2} parent=0 // pred_check_branch
    %9 = sbr.rel (0) target = $region5
  $region4: #{pepper_net_multi_core3_forward.2} parent=0 // pred_region
    _
  $region5: #{pepper_net_multi_core3_forward.2} parent=0 // pred_fallthru
    _
  // Predicated region
  $region6: #{pepper_net_multi_core3_forward.2} parent=0 // pred_check
    _
  $region7: #{pepper_net_multi_core3_forward.2} parent=0 // pred_check_branch
    %11 = sbr.rel (0) target = $region9
  $region8: #{pepper_net_multi_core3_forward.2} parent=0 // pred_region
    _
  $region9: #{pepper_net_multi_core3_forward.2} parent=0 // pred_fallthru
    _
  // Predicated region
  $region10: #{pepper_net_multi_core3_forward.2} parent=0 // pred_check
    _
  $region11: #{pepper_net_multi_core3_forward.2} parent=0 // pred_check_branch
    %13 = sbr.rel (0) target = $region13
  $region12: #{pepper_net_multi_core3_forward.2} parent=0 // pred_region
    _
  $region13: #{pepper_net_multi_core3_forward.2} parent=0 // pred_fallthru
    _
  %v14 = vld [vmem:[%s0] sm:$0xff]
  %v15 = vld [vmem:[%s0 + $0x8] sm:$0xff]
  %v16 = vld [vmem:[%s0 + $0x10] sm:$0xff]
  %v17 = vld [vmem:[%s0 + $0x18] sm:$0xff]
  %v18 = vld [vmem:[%s0 + $0x20] sm:$0xff]
  %v19 = vld [vmem:[%s0 + $0x28] sm:$0xff]
  %v20 = vld [vmem:[%s0 + $0x30] sm:$0xff]
  %v21 = vld [vmem:[%s0 + $0x38] sm:$0xff]
  %v22 = vld [vmem:[%s0 + $0x40] sm:$0xff]
  %v23 = vld [vmem:[%s0 + $0x48] sm:$0xff]
  %v24 = vld [vmem:[%s0 + $0x50] sm:$0xff]
  %v25 = vld [vmem:[%s0 + $0x58] sm:$0xff]
  %v26 = vld [vmem:[%s0 + $0x60] sm:$0xff]
  %v27 = vld [vmem:[%s0 + $0x68] sm:$0xff]
  %v28 = vld [vmem:[%s0 + $0x70] sm:$0xff]
  %v29 = vld [vmem:[%s0 + $0x78] sm:$0xff]
  %v30 = vld [vmem:[%s1] sm:$0xff]
  %v31 = vld [vmem:[%s1 + $0x8] sm:$0xff]
  %v32 = vld [vmem:[%s1 + $0x10] sm:$0xff]
  %v33 = vld [vmem:[%s1 + $0x18] sm:$0xff]
  %v34 = vld [vmem:[%s1 + $0x20] sm:$0xf]
  %v35 = vld [vmem:[%s2] sm:$0x1]
  %v37 = vlaneseq
  %v38 = vshrl.u32 %v37, 7
  %v39 = vsub.s32 0, %v38
  %v40 = vrot.slane %v35, %v39
  %vm42 = vcmask 293888
  %v44 = vsel %vm42, %v14, 0
  %v47 = vsel %vm42, %v15, 0
  %v50 = vsel %vm42, %v16, 0
  %v53 = vsel %vm42, %v17, 0
  %v56 = vsel %vm42, %v18, 0
  %v59 = vsel %vm42, %v19, 0
  %v62 = vsel %vm42, %v20, 0
  %v65 = vsel %vm42, %v21, 0
  %v68 = vsel %vm42, %v22, 0
  %v71 = vsel %vm42, %v23, 0
  %v74 = vsel %vm42, %v24, 0
  %v77 = vsel %vm42, %v25, 0
  %v80 = vsel %vm42, %v26, 0
  %v83 = vsel %vm42, %v27, 0
  %v86 = vsel %vm42, %v28, 0
  %v89 = vsel %vm42, %v29, 0
  %vm91 = vcmask 1043456
  %v93 = vsel %vm91, %v34, 0
  %95 = vmatprep.subr.mxu0 0.0
  %96 = vmatpush1.msra.mxu0 0.0
  %97 = vmatprep.subr.mxu0 0.0
  %98 = vmatpush1.msra.mxu0 0.0
  %99 = vmatprep.subr.mxu0 0.0
  %100 = vmatpush1.msra.mxu0 0.0
  %101 = vmatprep.subr.mxu0 0.0
  %102 = vmatpush1.msra.mxu0 0.0
  %103 = vmatprep.subr.mxu0 0.0
  %104 = vmatpush1.msra.mxu0 0.0
  %105 = vmatprep.subr.mxu0 0.0
  %106 = vmatpush1.msra.mxu0 0.0
  %107 = vmatprep.subr.mxu0 0.0
  %108 = vmatpush1.msra.mxu0 0.0
  %109 = vmatprep.subr.mxu0 0.0
  %110 = vmatpush1.msra.mxu0 0.0
  %111 = vmatprep.subr.mxu0 0.0
  %112 = vmatpush1.msra.mxu0 0.0
  %113 = vmatprep.subr.mxu0 0.0
  %114 = vmatpush1.msra.mxu0 0.0
  %115 = vmatprep.subr.mxu0 0.0
  %116 = vmatpush1.msra.mxu0 0.0
  %117 = vmatprep.subr.mxu0 0.0
  %118 = vmatpush1.msra.mxu0 %v93
  %119 = vmatprep.subr.mxu0 0.0
  %120 = vmatpush1.msra.mxu0 %v33
  %121 = vmatprep.subr.mxu0 0.0
  %122 = vmatpush1.msra.mxu0 %v32
  %123 = vmatprep.subr.mxu0 0.0
  %124 = vmatpush1.msra.mxu0 %v31
  %125 = vmatprep.subr.mxu0 0.0
  %126 = vmatpush1.msra.mxu0 %v30
  %127 = vmatprep.subr.mxu0 0.0
  %128 = vmatpush2.msra.mxu0 0.0
  %129 = vmatprep.subr.mxu0 0.0
  %130 = vmatpush2.msra.mxu0 0.0
  %131 = vmatprep.subr.mxu0 0.0
  %132 = vmatpush2.msra.mxu0 0.0
  %133 = vmatprep.subr.mxu0 0.0
  %134 = vmatpush2.msra.mxu0 0.0
  %135 = vmatprep.subr.mxu0 0.0
  %136 = vmatpush2.msra.mxu0 0.0
  %137 = vmatprep.subr.mxu0 0.0
  %138 = vmatpush2.msra.mxu0 0.0
  %139 = vmatprep.subr.mxu0 0.0
  %140 = vmatpush2.msra.mxu0 0.0
  %141 = vmatprep.subr.mxu0 0.0
  %142 = vmatpush2.msra.mxu0 0.0
  %143 = vmatprep.subr.mxu0 0.0
  %144 = vmatpush2.msra.mxu0 0.0
  %145 = vmatprep.subr.mxu0 0.0
  %146 = vmatpush2.msra.mxu0 0.0
  %147 = vmatprep.subr.mxu0 0.0
  %148 = vmatpush2.msra.mxu0 0.0
  %149 = vmatprep.subr.mxu0 0.0
  %150 = vmatpush2.msra.mxu0 0.0
  %151 = vmatprep.subr.mxu0 0.0
  %152 = vmatpush2.msra.mxu0 0.0
  %153 = vmatprep.subr.mxu0 0.0
  %154 = vmatpush2.msra.mxu0 0.0
  %155 = vmatprep.subr.mxu0 0.0
  %156 = vmatpush2.msra.mxu0 0.0
  %157 = vmatprep.subr.mxu0 0.0
  %158 = vmatpush2.msra.mxu0 0.0
  %159 = vmatprep.mubr.f32.mxu0 0.0
  %160 = vmatmul.mubr.f32.gmra.mxu0 %v44
  %v161 = vpop.f32.mrf.mxu0
  %v162 = vadd.f32 %v40, %v161
  %v163 = vpop.f32.mrf.mxu0
  %164 = vmatprep.mubr.f32.mxu0 0.0
  %165 = vmatmul.mubr.f32.gmra.mxu0 %v47
  %v166 = vpop.f32.mrf.mxu0
  %v167 = vadd.f32 %v40, %v166
  %v168 = vpop.f32.mrf.mxu0
  %169 = vmatprep.mubr.f32.mxu0 0.0
  %170 = vmatmul.mubr.f32.gmra.mxu0 %v50
  %v171 = vpop.f32.mrf.mxu0
  %v172 = vadd.f32 %v40, %v171
  %v173 = vpop.f32.mrf.mxu0
  %174 = vmatprep.mubr.f32.mxu0 0.0
  %175 = vmatmul.mubr.f32.gmra.mxu0 %v53
  %v176 = vpop.f32.mrf.mxu0
  %v177 = vadd.f32 %v40, %v176
  %v178 = vpop.f32.mrf.mxu0
  %179 = vmatprep.mubr.f32.mxu0 0.0
  %180 = vmatmul.mubr.f32.gmra.mxu0 %v56
  %v181 = vpop.f32.mrf.mxu0
  %v182 = vadd.f32 %v40, %v181
  %v183 = vpop.f32.mrf.mxu0
  %184 = vmatprep.mubr.f32.mxu0 0.0
  %185 = vmatmul.mubr.f32.gmra.mxu0 %v59
  %v186 = vpop.f32.mrf.mxu0
  %v187 = vadd.f32 %v40, %v186
  %v188 = vpop.f32.mrf.mxu0
  %189 = vmatprep.mubr.f32.mxu0 0.0
  %190 = vmatmul.mubr.f32.gmra.mxu0 %v62
  %v191 = vpop.f32.mrf.mxu0
  %v192 = vadd.f32 %v40, %v191
  %v193 = vpop.f32.mrf.mxu0
  %194 = vmatprep.mubr.f32.mxu0 0.0
  %195 = vmatmul.mubr.f32.gmra.mxu0 %v65
  %v196 = vpop.f32.mrf.mxu0
  %v197 = vadd.f32 %v40, %v196
  %v198 = vpop.f32.mrf.mxu0
  %199 = vmatprep.mubr.f32.mxu0 0.0
  %200 = vmatmul.mubr.f32.gmra.mxu0 %v68
  %v201 = vpop.f32.mrf.mxu0
  %v202 = vadd.f32 %v40, %v201
  %v203 = vpop.f32.mrf.mxu0
  %204 = vmatprep.mubr.f32.mxu0 0.0
  %205 = vmatmul.mubr.f32.gmra.mxu0 %v71
  %v206 = vpop.f32.mrf.mxu0
  %v207 = vadd.f32 %v40, %v206
  %v208 = vpop.f32.mrf.mxu0
  %209 = vmatprep.mubr.f32.mxu0 0.0
  %210 = vmatmul.mubr.f32.gmra.mxu0 %v74
  %v211 = vpop.f32.mrf.mxu0
  %v212 = vadd.f32 %v40, %v211
  %v213 = vpop.f32.mrf.mxu0
  %214 = vmatprep.mubr.f32.mxu0 0.0
  %215 = vmatmul.mubr.f32.gmra.mxu0 %v77
  %v216 = vpop.f32.mrf.mxu0
  %v217 = vadd.f32 %v40, %v216
  %v218 = vpop.f32.mrf.mxu0
  %219 = vmatprep.mubr.f32.mxu0 0.0
  %220 = vmatmul.mubr.f32.gmra.mxu0 %v80
  %v221 = vpop.f32.mrf.mxu0
  %v222 = vadd.f32 %v40, %v221
  %v223 = vpop.f32.mrf.mxu0
  %224 = vmatprep.mubr.f32.mxu0 0.0
  %225 = vmatmul.mubr.f32.gmra.mxu0 %v83
  %v226 = vpop.f32.mrf.mxu0
  %v227 = vadd.f32 %v40, %v226
  %v228 = vpop.f32.mrf.mxu0
  %229 = vmatprep.mubr.f32.mxu0 0.0
  %230 = vmatmul.mubr.f32.gmra.mxu0 %v86
  %v231 = vpop.f32.mrf.mxu0
  %v232 = vadd.f32 %v40, %v231
  %v233 = vpop.f32.mrf.mxu0
  %234 = vmatprep.mubr.f32.mxu0 0.0
  %235 = vmatmul.mubr.f32.gmra.mxu0 %v89
  %v236 = vpop.f32.mrf.mxu0
  %v237 = vadd.f32 %v40, %v236
  %v238 = vpop.f32.mrf.mxu0
  %239 = vdwg.mxu0
  %v240 = vmax.f32 %v162, 0.0
  %v241 = vmax.f32 %v167, 0.0
  %v242 = vmax.f32 %v172, 0.0
  %v243 = vmax.f32 %v177, 0.0
  %v244 = vmax.f32 %v182, 0.0
  %v245 = vmax.f32 %v187, 0.0
  %v246 = vmax.f32 %v192, 0.0
  %v247 = vmax.f32 %v197, 0.0
  %v248 = vmax.f32 %v202, 0.0
  %v249 = vmax.f32 %v207, 0.0
  %v250 = vmax.f32 %v212, 0.0
  %v251 = vmax.f32 %v217, 0.0
  %v252 = vmax.f32 %v222, 0.0
  %v253 = vmax.f32 %v227, 0.0
  %v254 = vmax.f32 %v232, 0.0
  %v255 = vmax.f32 %v237, 0.0
  %vm256 = vcmask 64512
  %257 = vst.msk [vmem:[%s3] sm:$0xff] %vm256, %v240
  %258 = vst.msk [vmem:[%s3 + $0x8] sm:$0xff] %vm256, %v241
  %259 = vst.msk [vmem:[%s3 + $0x10] sm:$0xff] %vm256, %v242
  %260 = vst.msk [vmem:[%s3 + $0x18] sm:$0xff] %vm256, %v243
  %261 = vst.msk [vmem:[%s3 + $0x20] sm:$0xff] %vm256, %v244
  %262 = vst.msk [vmem:[%s3 + $0x28] sm:$0xff] %vm256, %v245
  %263 = vst.msk [vmem:[%s3 + $0x30] sm:$0xff] %vm256, %v246
  %264 = vst.msk [vmem:[%s3 + $0x38] sm:$0xff] %vm256, %v247
  %265 = vst.msk [vmem:[%s3 + $0x40] sm:$0xff] %vm256, %v248
  %266 = vst.msk [vmem:[%s3 + $0x48] sm:$0xff] %vm256, %v249
  %267 = vst.msk [vmem:[%s3 + $0x50] sm:$0xff] %vm256, %v250
  %268 = vst.msk [vmem:[%s3 + $0x58] sm:$0xff] %vm256, %v251
  %269 = vst.msk [vmem:[%s3 + $0x60] sm:$0xff] %vm256, %v252
  %270 = vst.msk [vmem:[%s3 + $0x68] sm:$0xff] %vm256, %v253
  %271 = vst.msk [vmem:[%s3 + $0x70] sm:$0xff] %vm256, %v254
  %272 = vst.msk [vmem:[%s3 + $0x78] sm:$0xff] %vm256, %v255
  // Predicated region
  $region14: #{pepper_net_multi_core3_forward.2} parent=0 // pred_check
    _
  $region15: #{pepper_net_multi_core3_forward.2} parent=0 // pred_check_branch
    %274 = sbr.rel (0) target = $region17
  $region16: #{pepper_net_multi_core3_forward.2} parent=0 // pred_region
    _
  $region17: #{pepper_net_multi_core3_forward.2} parent=0 // pred_fallthru
    _
  // Predicated region
  $region18: #{pepper_net_multi_core3_forward.2} parent=0 // pred_check
    _
  $region19: #{pepper_net_multi_core3_forward.2} parent=0 // pred_check_branch
    %276 = sbr.rel (0) target = $region21
  $region20: #{pepper_net_multi_core3_forward.2} parent=0 // pred_region
    _
  $region21: #{pepper_net_multi_core3_forward.2} parent=0 // pred_fallthru
    _

// kernel: tile.9
$region0: #{tile.9}
  %s0 = inlined_call_operand.vmem [shape: f32[2,3,32], index: 0, kind: input, shape index: {}]
  %s1 = inlined_call_operand.vmem [shape: f32[2,96], index: 1, kind: output, shape index: {}]
  $region1: #{tile.9} parent=0
    #allocation0 [shape = 'u8[4096]{0}', space=vmem, size = 0x1000, scoped, tag = 'scoped mem for output reshape']
    #allocation1 [shape = 'u8[8192]{0}', space=vmem, size = 0x2000, scoped, tag = 'scoped mem for input reshape']
    %s3 = sshll.u32 1, 4
    %s4 = ssub.s32 %s3, 1
    %s5 = scalar_lea.vmem %s0, 4
    %v6 = vld [vmem:[%s5] sm:%s4]
    %s7 = scalar_lea.vmem [#allocation1], 8
    %8 = vst [vmem:[%s7] sm:%s4] %v6
    %v9 = vld [vmem:[%s0] sm:%s4]
    %10 = vst [vmem:[#allocation1] sm:%s4] %v9
    %s11 = smov 3
    %v12 = vld [vmem:[#allocation1] ss:$8 sm:%s11]
    %vm13 = vcmask 261120
    %14 = vst.msk [vmem:[#allocation0] sm:$0x3] %vm13, %v12
    %s15 = scalar_lea.vmem [#allocation1], 2
    %s16 = smov 3
    %v17 = vld [vmem:[%s15] ss:$8 sm:%s16]
    %18 = vrot.lane.b32.xlu0 %v17, 64
    %v19 = vpop.permute.xlu0 %18
    %vm20 = vcmask 785920
    %21 = vst.msk [vmem:[#allocation0] sm:$0x3] %vm20, %v19
    %s22 = scalar_lea.vmem [#allocation1], 1
    %s23 = smov 3
    %v24 = vld [vmem:[%s22] ss:$8 sm:%s23]
    %25 = vrot.lane.b32.xlu0 %v24, 32
    %v26 = vpop.permute.xlu0 %25
    %vm27 = vcmask 523520
    %28 = vst.msk [vmem:[#allocation0] sm:$0x3] %vm27, %v26
    %s30 = sshll.u32 1, 2
    %s31 = ssub.s32 %s30, 1
    %v33 = vld [vmem:[#allocation0] sm:%s31]
    %s34 = sshll.u32 1, 2
    %s35 = ssub.s32 %s34, 1
    %36 = vst [vmem:[%s1] sm:%s35] %v33

// kernel: pepper_net_multi_core3_forward.3
$region0: #{pepper_net_multi_core3_forward.3}
  #allocation0 [shape = 'u32[]', space=smem, size = 0x4, offset = 0x4, fixed_abs, tag = 'smem constant byte address 0x4 - core index']
  #allocation1 [shape = 'u32[144,128]{1,0:T(1,128)}', space=vmem, size = 0x12000, scoped, tag = 'internal scratch']
  %s0 = inlined_call_operand.vmem [shape: f32[2,1152], index: 0, kind: input, shape index: {}]
  %s1 = inlined_call_operand.vmem [shape: f32[1152,256], index: 1, kind: input, shape index: {}]
  %s2 = inlined_call_operand.vmem [shape: f32[1,256], index: 2, kind: input, shape index: {}]
  %s3 = inlined_call_operand.vmem [shape: f32[2,96], index: 3, kind: input, shape index: {}]
  %s4 = inlined_call_operand.vmem [shape: f32[256,96], index: 4, kind: input, shape index: {}]
  %s5 = inlined_call_operand.vmem [shape: f32[1,96], index: 5, kind: input, shape index: {}]
  %s6 = inlined_call_operand.vmem [shape: f32[256,96], index: 6, kind: input, shape index: {}]
  %s7 = inlined_call_operand.vmem [shape: f32[1,96], index: 7, kind: input, shape index: {}]
  %s8 = inlined_call_operand.vmem [shape: f32[96,24], index: 8, kind: input, shape index: {}]
  %s9 = inlined_call_operand.vmem [shape: f32[1,24], index: 9, kind: input, shape index: {}]
  %s10 = inlined_call_operand.vmem [shape: f32[2,24], index: 10, kind: input, shape index: {}]
  %s11 = inlined_call_operand.vmem [shape: f32[24,96], index: 11, kind: input, shape index: {}]
  %s12 = inlined_call_operand.vmem [shape: f32[1,96], index: 12, kind: input, shape index: {}]
  %s13 = inlined_call_operand.vmem [shape: f32[96,256], index: 13, kind: input, shape index: {}]
  %s14 = inlined_call_operand.vmem [shape: f32[1,256], index: 14, kind: input, shape index: {}]
  %s15 = inlined_call_operand.vmem [shape: f32[256,128], index: 15, kind: input, shape index: {}]
  %s16 = inlined_call_operand.vmem [shape: f32[1,128], index: 16, kind: input, shape index: {}]
  %s17 = inlined_call_operand.vmem [shape: f32[128,1024], index: 17, kind: input, shape index: {}]
  %s18 = inlined_call_operand.vmem [shape: f32[1,1024], index: 18, kind: input, shape index: {}]
  %s19 = inlined_call_operand.vmem [shape: f32[2,24], index: 19, kind: output, shape index: {0}]
  %s20 = inlined_call_operand.vmem [shape: f32[2,1024], index: 20, kind: output, shape index: {1}]
  %21 = xla_tuple %s19, %s20
  %s22 = sld [smem:[#allocation0]]
  $region94: #{pepper_net_multi_core3_forward.3} parent=0
    _
  %s24 = ssub.s32 1, %s22
  %s25 = scalar_select 0, %s24, %s22
  // Predicated region
  $region2: #{pepper_net_multi_core3_forward.3} parent=0 // pred_check
    _
  $region3: #{pepper_net_multi_core3_forward.3} parent=0 // pred_check_branch
    %27 = sbr.rel (0) target = $region5
  $region4: #{pepper_net_multi_core3_forward.3} parent=0 // pred_region
    _
  $region5: #{pepper_net_multi_core3_forward.3} parent=0 // pred_fallthru
    _
  // Predicated region
  $region6: #{pepper_net_multi_core3_forward.3} parent=0 // pred_check
    _
  $region7: #{pepper_net_multi_core3_forward.3} parent=0 // pred_check_branch
    %29 = sbr.rel (0) target = $region9
  $region8: #{pepper_net_multi_core3_forward.3} parent=0 // pred_region
    _
  $region9: #{pepper_net_multi_core3_forward.3} parent=0 // pred_fallthru
    _
  // Predicated region
  $region10: #{pepper_net_multi_core3_forward.3} parent=0 // pred_check
    _
  $region11: #{pepper_net_multi_core3_forward.3} parent=0 // pred_check_branch
    %31 = sbr.rel (0) target = $region13
  $region12: #{pepper_net_multi_core3_forward.3} parent=0 // pred_region
    _
  $region13: #{pepper_net_multi_core3_forward.3} parent=0 // pred_fallthru
    _
  // Predicated region
  $region14: #{pepper_net_multi_core3_forward.3} parent=0 // pred_check
    _
  $region15: #{pepper_net_multi_core3_forward.3} parent=0 // pred_check_branch
    %33 = sbr.rel (0) target = $region17
  $region16: #{pepper_net_multi_core3_forward.3} parent=0 // pred_region
    _
  $region17: #{pepper_net_multi_core3_forward.3} parent=0 // pred_fallthru
    _
  // Predicated region
  $region18: #{pepper_net_multi_core3_forward.3} parent=0 // pred_check
    _
  $region19: #{pepper_net_multi_core3_forward.3} parent=0 // pred_check_branch
    %35 = sbr.rel (0) target = $region21
  $region20: #{pepper_net_multi_core3_forward.3} parent=0 // pred_region
    _
  $region21: #{pepper_net_multi_core3_forward.3} parent=0 // pred_fallthru
    _
  // Predicated region
  $region22: #{pepper_net_multi_core3_forward.3} parent=0 // pred_check
    _
  $region23: #{pepper_net_multi_core3_forward.3} parent=0 // pred_check_branch
    %37 = sbr.rel (0) target = $region25
  $region24: #{pepper_net_multi_core3_forward.3} parent=0 // pred_region
    _
  $region25: #{pepper_net_multi_core3_forward.3} parent=0 // pred_fallthru
    _
  // Predicated region
  $region26: #{pepper_net_multi_core3_forward.3} parent=0 // pred_check
    _
  $region27: #{pepper_net_multi_core3_forward.3} parent=0 // pred_check_branch
    %39 = sbr.rel (0) target = $region29
  $region28: #{pepper_net_multi_core3_forward.3} parent=0 // pred_region
    _
  $region29: #{pepper_net_multi_core3_forward.3} parent=0 // pred_fallthru
    _
  // Predicated region
  $region30: #{pepper_net_multi_core3_forward.3} parent=0 // pred_check
    _
  $region31: #{pepper_net_multi_core3_forward.3} parent=0 // pred_check_branch
    %41 = sbr.rel (0) target = $region33
  $region32: #{pepper_net_multi_core3_forward.3} parent=0 // pred_region
    _
  $region33: #{pepper_net_multi_core3_forward.3} parent=0 // pred_fallthru
    _
  // Predicated region
  $region34: #{pepper_net_multi_core3_forward.3} parent=0 // pred_check
    _
  $region35: #{pepper_net_multi_core3_forward.3} parent=0 // pred_check_branch
    %43 = sbr.rel (0) target = $region37
  $region36: #{pepper_net_multi_core3_forward.3} parent=0 // pred_region
    _
  $region37: #{pepper_net_multi_core3_forward.3} parent=0 // pred_fallthru
    _
  // Predicated region
  $region38: #{pepper_net_multi_core3_forward.3} parent=0 // pred_check
    _
  $region39: #{pepper_net_multi_core3_forward.3} parent=0 // pred_check_branch
    %45 = sbr.rel (0) target = $region41
  $region40: #{pepper_net_multi_core3_forward.3} parent=0 // pred_region
    _
  $region41: #{pepper_net_multi_core3_forward.3} parent=0 // pred_fallthru
    _
  // Predicated region
  $region42: #{pepper_net_multi_core3_forward.3} parent=0 // pred_check
    _
  $region43: #{pepper_net_multi_core3_forward.3} parent=0 // pred_check_branch
    %47 = sbr.rel (0) target = $region45
  $region44: #{pepper_net_multi_core3_forward.3} parent=0 // pred_region
    _
  $region45: #{pepper_net_multi_core3_forward.3} parent=0 // pred_fallthru
    _
  // Predicated region
  $region46: #{pepper_net_multi_core3_forward.3} parent=0 // pred_check
    _
  $region47: #{pepper_net_multi_core3_forward.3} parent=0 // pred_check_branch
    %49 = sbr.rel (0) target = $region49
  $region48: #{pepper_net_multi_core3_forward.3} parent=0 // pred_region
    _
  $region49: #{pepper_net_multi_core3_forward.3} parent=0 // pred_fallthru
    _
  // Predicated region
  $region50: #{pepper_net_multi_core3_forward.3} parent=0 // pred_check
    _
  $region51: #{pepper_net_multi_core3_forward.3} parent=0 // pred_check_branch
    %51 = sbr.rel (0) target = $region53
  $region52: #{pepper_net_multi_core3_forward.3} parent=0 // pred_region
    _
  $region53: #{pepper_net_multi_core3_forward.3} parent=0 // pred_fallthru
    _
  // Predicated region
  $region54: #{pepper_net_multi_core3_forward.3} parent=0 // pred_check
    _
  $region55: #{pepper_net_multi_core3_forward.3} parent=0 // pred_check_branch
    %53 = sbr.rel (0) target = $region57
  $region56: #{pepper_net_multi_core3_forward.3} parent=0 // pred_region
    _
  $region57: #{pepper_net_multi_core3_forward.3} parent=0 // pred_fallthru
    _
  // Predicated region
  $region58: #{pepper_net_multi_core3_forward.3} parent=0 // pred_check
    _
  $region59: #{pepper_net_multi_core3_forward.3} parent=0 // pred_check_branch
    %55 = sbr.rel (0) target = $region61
  $region60: #{pepper_net_multi_core3_forward.3} parent=0 // pred_region
    _
  $region61: #{pepper_net_multi_core3_forward.3} parent=0 // pred_fallthru
    _
  // Predicated region
  $region62: #{pepper_net_multi_core3_forward.3} parent=0 // pred_check
    _
  $region63: #{pepper_net_multi_core3_forward.3} parent=0 // pred_check_branch
    %57 = sbr.rel (0) target = $region65
  $region64: #{pepper_net_multi_core3_forward.3} parent=0 // pred_region
    _
  $region65: #{pepper_net_multi_core3_forward.3} parent=0 // pred_fallthru
    _
  // Predicated region
  $region66: #{pepper_net_multi_core3_forward.3} parent=0 // pred_check
    _
  $region67: #{pepper_net_multi_core3_forward.3} parent=0 // pred_check_branch
    %59 = sbr.rel (0) target = $region69
  $region68: #{pepper_net_multi_core3_forward.3} parent=0 // pred_region
    _
  $region69: #{pepper_net_multi_core3_forward.3} parent=0 // pred_fallthru
    _
  // Predicated region
  $region70: #{pepper_net_multi_core3_forward.3} parent=0 // pred_check
    _
  $region71: #{pepper_net_multi_core3_forward.3} parent=0 // pred_check_branch
    %61 = sbr.rel (0) target = $region73
  $region72: #{pepper_net_multi_core3_forward.3} parent=0 // pred_region
    _
  $region73: #{pepper_net_multi_core3_forward.3} parent=0 // pred_fallthru
    _
  // Predicated region
  $region74: #{pepper_net_multi_core3_forward.3} parent=0 // pred_check
    _
  $region75: #{pepper_net_multi_core3_forward.3} parent=0 // pred_check_branch
    %63 = sbr.rel (0) target = $region77
  $region76: #{pepper_net_multi_core3_forward.3} parent=0 // pred_region
    _
  $region77: #{pepper_net_multi_core3_forward.3} parent=0 // pred_fallthru
    _
  %v64 = vld [vmem:[%s0] sm:$0xff]
  %v65 = vld [vmem:[%s0 + $0x8] sm:$0xff]
  %v66 = vld [vmem:[%s0 + $0x10] sm:$0x3]
  %v67 = vld [vmem:[%s1] sm:$0xff]
  %v68 = vld [vmem:[%s1 + $0x8] sm:$0xff]
  %v69 = vld [vmem:[%s1 + $0x10] sm:$0xff]
  %v70 = vld [vmem:[%s1 + $0x18] sm:$0xff]
  %v71 = vld [vmem:[%s1 + $0x20] sm:$0xff]
  %v72 = vld [vmem:[%s1 + $0x28] sm:$0xff]
  %v73 = vld [vmem:[%s1 + $0x30] sm:$0xff]
  %v74 = vld [vmem:[%s1 + $0x38] sm:$0xff]
  %v75 = vld [vmem:[%s1 + $0x40] sm:$0xff]
  %v76 = vld [vmem:[%s1 + $0x48] sm:$0xff]
  %v77 = vld [vmem:[%s1 + $0x50] sm:$0xff]
  %v78 = vld [vmem:[%s1 + $0x58] sm:$0xff]
  %v79 = vld [vmem:[%s1 + $0x60] sm:$0xff]
  %v80 = vld [vmem:[%s1 + $0x68] sm:$0xff]
  %v81 = vld [vmem:[%s1 + $0x70] sm:$0xff]
  %v82 = vld [vmem:[%s1 + $0x78] sm:$0xff]
  %v83 = vld [vmem:[%s1 + $0x80] sm:$0xff]
  %v84 = vld [vmem:[%s1 + $0x88] sm:$0xff]
  %v85 = vld [vmem:[%s1 + $0x90] sm:$0xff]
  %v86 = vld [vmem:[%s1 + $0x98] sm:$0xff]
  %v87 = vld [vmem:[%s1 + $0xa0] sm:$0xff]
  %v88 = vld [vmem:[%s1 + $0xa8] sm:$0xff]
  %v89 = vld [vmem:[%s1 + $0xb0] sm:$0xff]
  %v90 = vld [vmem:[%s1 + $0xb8] sm:$0xff]
  %v91 = vld [vmem:[%s1 + $0xc0] sm:$0xff]
  %v92 = vld [vmem:[%s1 + $0xc8] sm:$0xff]
  %v93 = vld [vmem:[%s1 + $0xd0] sm:$0xff]
  %v94 = vld [vmem:[%s1 + $0xd8] sm:$0xff]
  %v95 = vld [vmem:[%s1 + $0xe0] sm:$0xff]
  %v96 = vld [vmem:[%s1 + $0xe8] sm:$0xff]
  %v97 = vld [vmem:[%s1 + $0xf0] sm:$0xff]
  %v98 = vld [vmem:[%s1 + $0xf8] sm:$0xff]
  %v99 = vld [vmem:[%s1 + $0x100] sm:$0xff]
  %v100 = vld [vmem:[%s1 + $0x108] sm:$0xff]
  %v101 = vld [vmem:[%s1 + $0x110] sm:$0xff]
  %v102 = vld [vmem:[%s1 + $0x118] sm:$0xff]
  %v103 = vld [vmem:[%s1 + $0x120] sm:$0xff]
  %v104 = vld [vmem:[%s1 + $0x128] sm:$0xff]
  %v105 = vld [vmem:[%s1 + $0x130] sm:$0xff]
  %v106 = vld [vmem:[%s1 + $0x138] sm:$0xff]
  %v107 = vld [vmem:[%s1 + $0x140] sm:$0xff]
  %v108 = vld [vmem:[%s1 + $0x148] sm:$0xff]
  %v109 = vld [vmem:[%s1 + $0x150] sm:$0xff]
  %v110 = vld [vmem:[%s1 + $0x158] sm:$0xff]
  %v111 = vld [vmem:[%s1 + $0x160] sm:$0xff]
  %v112 = vld [vmem:[%s1 + $0x168] sm:$0xff]
  %v113 = vld [vmem:[%s1 + $0x170] sm:$0xff]
  %v114 = vld [vmem:[%s1 + $0x178] sm:$0xff]
  %v115 = vld [vmem:[%s1 + $0x180] sm:$0xff]
  %v116 = vld [vmem:[%s1 + $0x188] sm:$0xff]
  %v117 = vld [vmem:[%s1 + $0x190] sm:$0xff]
  %v118 = vld [vmem:[%s1 + $0x198] sm:$0xff]
  %v119 = vld [vmem:[%s1 + $0x1a0] sm:$0xff]
  %v120 = vld [vmem:[%s1 + $0x1a8] sm:$0xff]
  %v121 = vld [vmem:[%s1 + $0x1b0] sm:$0xff]
  %v122 = vld [vmem:[%s1 + $0x1b8] sm:$0xff]
  %v123 = vld [vmem:[%s1 + $0x1c0] sm:$0xff]
  %v124 = vld [vmem:[%s1 + $0x1c8] sm:$0xff]
  %v125 = vld [vmem:[%s1 + $0x1d0] sm:$0xff]
  %v126 = vld [vmem:[%s1 + $0x1d8] sm:$0xff]
  %v127 = vld [vmem:[%s1 + $0x1e0] sm:$0xff]
  %v128 = vld [vmem:[%s1 + $0x1e8] sm:$0xff]
  %v129 = vld [vmem:[%s1 + $0x1f0] sm:$0xff]
  %v130 = vld [vmem:[%s1 + $0x1f8] sm:$0xff]
  %v131 = vld [vmem:[%s1 + $0x200] sm:$0xff]
  %v132 = vld [vmem:[%s1 + $0x208] sm:$0xff]
  %v133 = vld [vmem:[%s1 + $0x210] sm:$0xff]
  %v134 = vld [vmem:[%s1 + $0x218] sm:$0xff]
  %v135 = vld [vmem:[%s1 + $0x220] sm:$0xff]
  %v136 = vld [vmem:[%s1 + $0x228] sm:$0xff]
  %v137 = vld [vmem:[%s1 + $0x230] sm:$0xff]
  %v138 = vld [vmem:[%s1 + $0x238] sm:$0xff]
  %v139 = vld [vmem:[%s1 + $0x240] sm:$0xff]
  %v140 = vld [vmem:[%s1 + $0x248] sm:$0xff]
  %v141 = vld [vmem:[%s1 + $0x250] sm:$0xff]
  %v142 = vld [vmem:[%s1 + $0x258] sm:$0xff]
  %v143 = vld [vmem:[%s1 + $0x260] sm:$0xff]
  %v144 = vld [vmem:[%s1 + $0x268] sm:$0xff]
  %v145 = vld [vmem:[%s1 + $0x270] sm:$0xff]
  %v146 = vld [vmem:[%s1 + $0x278] sm:$0xff]
  %v147 = vld [vmem:[%s1 + $0x280] sm:$0xff]
  %v148 = vld [vmem:[%s1 + $0x288] sm:$0xff]
  %v149 = vld [vmem:[%s1 + $0x290] sm:$0xff]
  %v150 = vld [vmem:[%s1 + $0x298] sm:$0xff]
  %v151 = vld [vmem:[%s1 + $0x2a0] sm:$0xff]
  %v152 = vld [vmem:[%s1 + $0x2a8] sm:$0xff]
  %v153 = vld [vmem:[%s1 + $0x2b0] sm:$0xff]
  %v154 = vld [vmem:[%s1 + $0x2b8] sm:$0xff]
  %v155 = vld [vmem:[%s1 + $0x2c0] sm:$0xff]
  %v156 = vld [vmem:[%s1 + $0x2c8] sm:$0xff]
  %v157 = vld [vmem:[%s1 + $0x2d0] sm:$0xff]
  %v158 = vld [vmem:[%s1 + $0x2d8] sm:$0xff]
  %v159 = vld [vmem:[%s1 + $0x2e0] sm:$0xff]
  %v160 = vld [vmem:[%s1 + $0x2e8] sm:$0xff]
  %v161 = vld [vmem:[%s1 + $0x2f0] sm:$0xff]
  %v162 = vld [vmem:[%s1 + $0x2f8] sm:$0xff]
  %v163 = vld [vmem:[%s1 + $0x300] sm:$0xff]
  %v164 = vld [vmem:[%s1 + $0x308] sm:$0xff]
  %v165 = vld [vmem:[%s1 + $0x310] sm:$0xff]
  %v166 = vld [vmem:[%s1 + $0x318] sm:$0xff]
  %v167 = vld [vmem:[%s1 + $0x320] sm:$0xff]
  %v168 = vld [vmem:[%s1 + $0x328] sm:$0xff]
  %v169 = vld [vmem:[%s1 + $0x330] sm:$0xff]
  %v170 = vld [vmem:[%s1 + $0x338] sm:$0xff]
  %v171 = vld [vmem:[%s1 + $0x340] sm:$0xff]
  %v172 = vld [vmem:[%s1 + $0x348] sm:$0xff]
  %v173 = vld [vmem:[%s1 + $0x350] sm:$0xff]
  %v174 = vld [vmem:[%s1 + $0x358] sm:$0xff]
  %v175 = vld [vmem:[%s1 + $0x360] sm:$0xff]
  %v176 = vld [vmem:[%s1 + $0x368] sm:$0xff]
  %v177 = vld [vmem:[%s1 + $0x370] sm:$0xff]
  %v178 = vld [vmem:[%s1 + $0x378] sm:$0xff]
  %v179 = vld [vmem:[%s1 + $0x380] sm:$0xff]
  %v180 = vld [vmem:[%s1 + $0x388] sm:$0xff]
  %v181 = vld [vmem:[%s1 + $0x390] sm:$0xff]
  %v182 = vld [vmem:[%s1 + $0x398] sm:$0xff]
  %v183 = vld [vmem:[%s1 + $0x3a0] sm:$0xff]
  %v184 = vld [vmem:[%s1 + $0x3a8] sm:$0xff]
  %v185 = vld [vmem:[%s1 + $0x3b0] sm:$0xff]
  %v186 = vld [vmem:[%s1 + $0x3b8] sm:$0xff]
  %v187 = vld [vmem:[%s1 + $0x3c0] sm:$0xff]
  %v188 = vld [vmem:[%s1 + $0x3c8] sm:$0xff]
  %v189 = vld [vmem:[%s1 + $0x3d0] sm:$0xff]
  %v190 = vld [vmem:[%s1 + $0x3d8] sm:$0xff]
  %v191 = vld [vmem:[%s1 + $0x3e0] sm:$0xff]
  %v192 = vld [vmem:[%s1 + $0x3e8] sm:$0xff]
  %v193 = vld [vmem:[%s1 + $0x3f0] sm:$0xff]
  %v194 = vld [vmem:[%s1 + $0x3f8] sm:$0xff]
  %v195 = vld [vmem:[%s1 + $0x400] sm:$0xff]
  %v196 = vld [vmem:[%s1 + $0x408] sm:$0xff]
  %v197 = vld [vmem:[%s1 + $0x410] sm:$0xff]
  %v198 = vld [vmem:[%s1 + $0x418] sm:$0xff]
  %v199 = vld [vmem:[%s1 + $0x420] sm:$0xff]
  %v200 = vld [vmem:[%s1 + $0x428] sm:$0xff]
  %v201 = vld [vmem:[%s1 + $0x430] sm:$0xff]
  %v202 = vld [vmem:[%s1 + $0x438] sm:$0xff]
  %v203 = vld [vmem:[%s1 + $0x440] sm:$0xff]
  %v204 = vld [vmem:[%s1 + $0x448] sm:$0xff]
  %v205 = vld [vmem:[%s1 + $0x450] sm:$0xff]
  %v206 = vld [vmem:[%s1 + $0x458] sm:$0xff]
  %v207 = vld [vmem:[%s1 + $0x460] sm:$0xff]
  %v208 = vld [vmem:[%s1 + $0x468] sm:$0xff]
  %v209 = vld [vmem:[%s1 + $0x470] sm:$0xff]
  %v210 = vld [vmem:[%s1 + $0x478] sm:$0xff]
  %v211 = vld [vmem:[%s1 + $0x480] sm:$0xff]
  %v212 = vld [vmem:[%s1 + $0x488] sm:$0xff]
  %v213 = vld [vmem:[%s1 + $0x490] sm:$0xff]
  %v214 = vld [vmem:[%s1 + $0x498] sm:$0xff]
  %v215 = vld [vmem:[%s1 + $0x4a0] sm:$0xff]
  %v216 = vld [vmem:[%s1 + $0x4a8] sm:$0xff]
  %v217 = vld [vmem:[%s1 + $0x4b0] sm:$0xff]
  %v218 = vld [vmem:[%s1 + $0x4b8] sm:$0xff]
  %v219 = vld [vmem:[%s1 + $0x4c0] sm:$0xff]
  %v220 = vld [vmem:[%s1 + $0x4c8] sm:$0xff]
  %v221 = vld [vmem:[%s1 + $0x4d0] sm:$0xff]
  %v222 = vld [vmem:[%s1 + $0x4d8] sm:$0xff]
  %v223 = vld [vmem:[%s1 + $0x4e0] sm:$0xff]
  %v224 = vld [vmem:[%s1 + $0x4e8] sm:$0xff]
  %v225 = vld [vmem:[%s1 + $0x4f0] sm:$0xff]
  %v226 = vld [vmem:[%s1 + $0x4f8] sm:$0xff]
  %v227 = vld [vmem:[%s1 + $0x500] sm:$0xff]
  %v228 = vld [vmem:[%s1 + $0x508] sm:$0xff]
  %v229 = vld [vmem:[%s1 + $0x510] sm:$0xff]
  %v230 = vld [vmem:[%s1 + $0x518] sm:$0xff]
  %v231 = vld [vmem:[%s1 + $0x520] sm:$0xff]
  %v232 = vld [vmem:[%s1 + $0x528] sm:$0xff]
  %v233 = vld [vmem:[%s1 + $0x530] sm:$0xff]
  %v234 = vld [vmem:[%s1 + $0x538] sm:$0xff]
  %v235 = vld [vmem:[%s1 + $0x540] sm:$0xff]
  %v236 = vld [vmem:[%s1 + $0x548] sm:$0xff]
  %v237 = vld [vmem:[%s1 + $0x550] sm:$0xff]
  %v238 = vld [vmem:[%s1 + $0x558] sm:$0xff]
  %v239 = vld [vmem:[%s1 + $0x560] sm:$0xff]
  %v240 = vld [vmem:[%s1 + $0x568] sm:$0xff]
  %v241 = vld [vmem:[%s1 + $0x570] sm:$0xff]
  %v242 = vld [vmem:[%s1 + $0x578] sm:$0xff]
  %v243 = vld [vmem:[%s1 + $0x580] sm:$0xff]
  %v244 = vld [vmem:[%s1 + $0x588] sm:$0xff]
  %v245 = vld [vmem:[%s1 + $0x590] sm:$0xff]
  %v246 = vld [vmem:[%s1 + $0x598] sm:$0xff]
  %v247 = vld [vmem:[%s1 + $0x5a0] sm:$0xff]
  %v248 = vld [vmem:[%s1 + $0x5a8] sm:$0xff]
  %v249 = vld [vmem:[%s1 + $0x5b0] sm:$0xff]
  %v250 = vld [vmem:[%s1 + $0x5b8] sm:$0xff]
  %v251 = vld [vmem:[%s1 + $0x5c0] sm:$0xff]
  %v252 = vld [vmem:[%s1 + $0x5c8] sm:$0xff]
  %v253 = vld [vmem:[%s1 + $0x5d0] sm:$0xff]
  %v254 = vld [vmem:[%s1 + $0x5d8] sm:$0xff]
  %v255 = vld [vmem:[%s1 + $0x5e0] sm:$0xff]
  %v256 = vld [vmem:[%s1 + $0x5e8] sm:$0xff]
  %v257 = vld [vmem:[%s1 + $0x5f0] sm:$0xff]
  %v258 = vld [vmem:[%s1 + $0x5f8] sm:$0xff]
  %v259 = vld [vmem:[%s1 + $0x600] sm:$0xff]
  %v260 = vld [vmem:[%s1 + $0x608] sm:$0xff]
  %v261 = vld [vmem:[%s1 + $0x610] sm:$0xff]
  %v262 = vld [vmem:[%s1 + $0x618] sm:$0xff]
  %v263 = vld [vmem:[%s1 + $0x620] sm:$0xff]
  %v264 = vld [vmem:[%s1 + $0x628] sm:$0xff]
  %v265 = vld [vmem:[%s1 + $0x630] sm:$0xff]
  %v266 = vld [vmem:[%s1 + $0x638] sm:$0xff]
  %v267 = vld [vmem:[%s1 + $0x640] sm:$0xff]
  %v268 = vld [vmem:[%s1 + $0x648] sm:$0xff]
  %v269 = vld [vmem:[%s1 + $0x650] sm:$0xff]
  %v270 = vld [vmem:[%s1 + $0x658] sm:$0xff]
  %v271 = vld [vmem:[%s1 + $0x660] sm:$0xff]
  %v272 = vld [vmem:[%s1 + $0x668] sm:$0xff]
  %v273 = vld [vmem:[%s1 + $0x670] sm:$0xff]
  %v274 = vld [vmem:[%s1 + $0x678] sm:$0xff]
  %v275 = vld [vmem:[%s1 + $0x680] sm:$0xff]
  %v276 = vld [vmem:[%s1 + $0x688] sm:$0xff]
  %v277 = vld [vmem:[%s1 + $0x690] sm:$0xff]
  %v278 = vld [vmem:[%s1 + $0x698] sm:$0xff]
  %v279 = vld [vmem:[%s1 + $0x6a0] sm:$0xff]
  %v280 = vld [vmem:[%s1 + $0x6a8] sm:$0xff]
  %v281 = vld [vmem:[%s1 + $0x6b0] sm:$0xff]
  %v282 = vld [vmem:[%s1 + $0x6b8] sm:$0xff]
  %v283 = vld [vmem:[%s1 + $0x6c0] sm:$0xff]
  %v284 = vld [vmem:[%s1 + $0x6c8] sm:$0xff]
  %v285 = vld [vmem:[%s1 + $0x6d0] sm:$0xff]
  %v286 = vld [vmem:[%s1 + $0x6d8] sm:$0xff]
  %v287 = vld [vmem:[%s1 + $0x6e0] sm:$0xff]
  %v288 = vld [vmem:[%s1 + $0x6e8] sm:$0xff]
  %v289 = vld [vmem:[%s1 + $0x6f0] sm:$0xff]
  %v290 = vld [vmem:[%s1 + $0x6f8] sm:$0xff]
  %v291 = vld [vmem:[%s1 + $0x700] sm:$0xff]
  %v292 = vld [vmem:[%s1 + $0x708] sm:$0xff]
  %v293 = vld [vmem:[%s1 + $0x710] sm:$0xff]
  %v294 = vld [vmem:[%s1 + $0x718] sm:$0xff]
  %v295 = vld [vmem:[%s1 + $0x720] sm:$0xff]
  %v296 = vld [vmem:[%s1 + $0x728] sm:$0xff]
  %v297 = vld [vmem:[%s1 + $0x730] sm:$0xff]
  %v298 = vld [vmem:[%s1 + $0x738] sm:$0xff]
  %v299 = vld [vmem:[%s1 + $0x740] sm:$0xff]
  %v300 = vld [vmem:[%s1 + $0x748] sm:$0xff]
  %v301 = vld [vmem:[%s1 + $0x750] sm:$0xff]
  %v302 = vld [vmem:[%s1 + $0x758] sm:$0xff]
  %v303 = vld [vmem:[%s1 + $0x760] sm:$0xff]
  %v304 = vld [vmem:[%s1 + $0x768] sm:$0xff]
  %v305 = vld [vmem:[%s1 + $0x770] sm:$0xff]
  %v306 = vld [vmem:[%s1 + $0x778] sm:$0xff]
  %v307 = vld [vmem:[%s1 + $0x780] sm:$0xff]
  %v308 = vld [vmem:[%s1 + $0x788] sm:$0xff]
  %v309 = vld [vmem:[%s1 + $0x790] sm:$0xff]
  %v310 = vld [vmem:[%s1 + $0x798] sm:$0xff]
  %v311 = vld [vmem:[%s1 + $0x7a0] sm:$0xff]
  %v312 = vld [vmem:[%s1 + $0x7a8] sm:$0xff]
  %v313 = vld [vmem:[%s1 + $0x7b0] sm:$0xff]
  %v314 = vld [vmem:[%s1 + $0x7b8] sm:$0xff]
  %v315 = vld [vmem:[%s1 + $0x7c0] sm:$0xff]
  %v316 = vld [vmem:[%s1 + $0x7c8] sm:$0xff]
  %v317 = vld [vmem:[%s1 + $0x7d0] sm:$0xff]
  %v318 = vld [vmem:[%s1 + $0x7d8] sm:$0xff]
  %v319 = vld [vmem:[%s1 + $0x7e0] sm:$0xff]
  %v320 = vld [vmem:[%s1 + $0x7e8] sm:$0xff]
  %v321 = vld [vmem:[%s1 + $0x7f0] sm:$0xff]
  %v322 = vld [vmem:[%s1 + $0x7f8] sm:$0xff]
  %v323 = vld [vmem:[%s1 + $0x800] sm:$0xff]
  %v324 = vld [vmem:[%s1 + $0x808] sm:$0xff]
  %v325 = vld [vmem:[%s1 + $0x810] sm:$0xff]
  %v326 = vld [vmem:[%s1 + $0x818] sm:$0xff]
  %v327 = vld [vmem:[%s1 + $0x820] sm:$0xff]
  %v328 = vld [vmem:[%s1 + $0x828] sm:$0xff]
  %v329 = vld [vmem:[%s1 + $0x830] sm:$0xff]
  %v330 = vld [vmem:[%s1 + $0x838] sm:$0xff]
  %v331 = vld [vmem:[%s1 + $0x840] sm:$0xff]
  %v332 = vld [vmem:[%s1 + $0x848] sm:$0xff]
  %v333 = vld [vmem:[%s1 + $0x850] sm:$0xff]
  %v334 = vld [vmem:[%s1 + $0x858] sm:$0xff]
  %v335 = vld [vmem:[%s1 + $0x860] sm:$0xff]
  %v336 = vld [vmem:[%s1 + $0x868] sm:$0xff]
  %v337 = vld [vmem:[%s1 + $0x870] sm:$0xff]
  %v338 = vld [vmem:[%s1 + $0x878] sm:$0xff]
  %v339 = vld [vmem:[%s1 + $0x880] sm:$0xff]
  %v340 = vld [vmem:[%s1 + $0x888] sm:$0xff]
  %v341 = vld [vmem:[%s1 + $0x890] sm:$0xff]
  %v342 = vld [vmem:[%s1 + $0x898] sm:$0xff]
  %v343 = vld [vmem:[%s1 + $0x8a0] sm:$0xff]
  %v344 = vld [vmem:[%s1 + $0x8a8] sm:$0xff]
  %v345 = vld [vmem:[%s1 + $0x8b0] sm:$0xff]
  %v346 = vld [vmem:[%s1 + $0x8b8] sm:$0xff]
  %v347 = vld [vmem:[%s1 + $0x8c0] sm:$0xff]
  %v348 = vld [vmem:[%s1 + $0x8c8] sm:$0xff]
  %v349 = vld [vmem:[%s1 + $0x8d0] sm:$0xff]
  %v350 = vld [vmem:[%s1 + $0x8d8] sm:$0xff]
  %v351 = vld [vmem:[%s1 + $0x8e0] sm:$0xff]
  %v352 = vld [vmem:[%s1 + $0x8e8] sm:$0xff]
  %v353 = vld [vmem:[%s1 + $0x8f0] sm:$0xff]
  %v354 = vld [vmem:[%s1 + $0x8f8] sm:$0xff]
  %v355 = vld [vmem:[%s2] sm:$0x3]
  %v357 = vlaneseq
  %v358 = vshrl.u32 %v357, 7
  %v359 = vsub.s32 0, %v358
  %v360 = vrot.slane %v355, %v359
  %v361 = vlaneseq
  %v362 = vshrl.u32 %v361, 7
  %v363 = vsub.s32 1, %v362
  %v364 = vrot.slane %v355, %v363
  %v370 = vcombine.high %v64, %v64
  %v372 = vunpack.c.l.s4 1983009808
  %v373 = vunpack.c.0.s8 %v372
  %v374 = vlaneseq
  %v375 = vshrl.u32 %v374, 7
  %v376 = vsub.s32 %v373, %v375
  %v377 = vrot.slane %v64, %v376
  %v379 = vunpack.c.l.s4 1983009808
  %v380 = vunpack.c.0.s8 %v379
  %v381 = vlaneseq
  %v382 = vshrl.u32 %v381, 7
  %v383 = vsub.s32 %v380, %v382
  %v384 = vrot.slane %v370, %v383
  %v385 = vcombine.high %v377, %v377
  %v386 = vcombine.high %v384, %v384
  %v387 = vcombine.high %v65, %v65
  %v389 = vunpack.c.l.s4 1983009808
  %v390 = vunpack.c.0.s8 %v389
  %v391 = vlaneseq
  %v392 = vshrl.u32 %v391, 7
  %v393 = vsub.s32 %v390, %v392
  %v394 = vrot.slane %v65, %v393
  %v396 = vunpack.c.l.s4 1983009808
  %v397 = vunpack.c.0.s8 %v396
  %v398 = vlaneseq
  %v399 = vshrl.u32 %v398, 7
  %v400 = vsub.s32 %v397, %v399
  %v401 = vrot.slane %v387, %v400
  %v402 = vcombine.high %v394, %v394
  %v403 = vcombine.high %v401, %v401
  %v405 = vunpack.c.l.s4 1983009808
  %v406 = vunpack.c.0.s8 %v405
  %v407 = vlaneseq
  %v408 = vshrl.u32 %v407, 7
  %v409 = vsub.s32 %v406, %v408
  %v410 = vrot.slane %v66, %v409
  %420 = vmatprep.subr.mxu0 %v98
  %421 = vmatpush1.msra.mxu0 %v97
  %422 = vmatprep.subr.mxu0 %v96
  %423 = vmatpush1.msra.mxu0 %v95
  %424 = vmatprep.subr.mxu0 %v94
  %425 = vmatpush1.msra.mxu0 %v93
  %426 = vmatprep.subr.mxu0 %v92
  %427 = vmatpush1.msra.mxu0 %v91
  %428 = vmatprep.subr.mxu0 %v90
  %429 = vmatpush1.msra.mxu0 %v89
  %430 = vmatprep.subr.mxu0 %v88
  %431 = vmatpush1.msra.mxu0 %v87
  %432 = vmatprep.subr.mxu0 %v86
  %433 = vmatpush1.msra.mxu0 %v85
  %434 = vmatprep.subr.mxu0 %v84
  %435 = vmatpush1.msra.mxu0 %v83
  %436 = vmatprep.subr.mxu0 %v82
  %437 = vmatpush1.msra.mxu0 %v81
  %438 = vmatprep.subr.mxu0 %v80
  %439 = vmatpush1.msra.mxu0 %v79
  %440 = vmatprep.subr.mxu0 %v78
  %441 = vmatpush1.msra.mxu0 %v77
  %442 = vmatprep.subr.mxu0 %v76
  %443 = vmatpush1.msra.mxu0 %v75
  %444 = vmatprep.subr.mxu0 %v74
  %445 = vmatpush1.msra.mxu0 %v73
  %446 = vmatprep.subr.mxu0 %v72
  %447 = vmatpush1.msra.mxu0 %v71
  %448 = vmatprep.subr.mxu0 %v70
  %449 = vmatpush1.msra.mxu0 %v69
  %450 = vmatprep.subr.mxu0 %v68
  %451 = vmatpush1.msra.mxu0 %v67
  %452 = vmatprep.subr.mxu0 %v130
  %453 = vmatpush2.msra.mxu0 %v129
  %454 = vmatprep.subr.mxu0 %v128
  %455 = vmatpush2.msra.mxu0 %v127
  %456 = vmatprep.subr.mxu0 %v126
  %457 = vmatpush2.msra.mxu0 %v125
  %458 = vmatprep.subr.mxu0 %v124
  %459 = vmatpush2.msra.mxu0 %v123
  %460 = vmatprep.subr.mxu0 %v122
  %461 = vmatpush2.msra.mxu0 %v121
  %462 = vmatprep.subr.mxu0 %v120
  %463 = vmatpush2.msra.mxu0 %v119
  %464 = vmatprep.subr.mxu0 %v118
  %465 = vmatpush2.msra.mxu0 %v117
  %466 = vmatprep.subr.mxu0 %v116
  %467 = vmatpush2.msra.mxu0 %v115
  %468 = vmatprep.subr.mxu0 %v114
  %469 = vmatpush2.msra.mxu0 %v113
  %470 = vmatprep.subr.mxu0 %v112
  %471 = vmatpush2.msra.mxu0 %v111
  %472 = vmatprep.subr.mxu0 %v110
  %473 = vmatpush2.msra.mxu0 %v109
  %474 = vmatprep.subr.mxu0 %v108
  %475 = vmatpush2.msra.mxu0 %v107
  %476 = vmatprep.subr.mxu0 %v106
  %477 = vmatpush2.msra.mxu0 %v105
  %478 = vmatprep.subr.mxu0 %v104
  %479 = vmatpush2.msra.mxu0 %v103
  %480 = vmatprep.subr.mxu0 %v102
  %481 = vmatpush2.msra.mxu0 %v101
  %482 = vmatprep.subr.mxu0 %v100
  %483 = vmatpush2.msra.mxu0 %v99
  %484 = vmatprep.mubr.f32.mxu0 %v385
  %485 = vmatmul.mubr.f32.gmra.mxu0 %v377
  %v486 = vpop.f32.mrf.mxu0
  %v487 = vadd.f32 %v360, %v486
  %v488 = vpop.f32.mrf.mxu0
  %v489 = vadd.f32 %v364, %v488
  %490 = vdwg.mxu0
  %491 = vmatprep.subr.mxu0 %v162
  %492 = vmatpush1.msra.mxu0 %v161
  %493 = vmatprep.subr.mxu0 %v160
  %494 = vmatpush1.msra.mxu0 %v159
  %495 = vmatprep.subr.mxu0 %v158
  %496 = vmatpush1.msra.mxu0 %v157
  %497 = vmatprep.subr.mxu0 %v156
  %498 = vmatpush1.msra.mxu0 %v155
  %499 = vmatprep.subr.mxu0 %v154
  %500 = vmatpush1.msra.mxu0 %v153
  %501 = vmatprep.subr.mxu0 %v152
  %502 = vmatpush1.msra.mxu0 %v151
  %503 = vmatprep.subr.mxu0 %v150
  %504 = vmatpush1.msra.mxu0 %v149
  %505 = vmatprep.subr.mxu0 %v148
  %506 = vmatpush1.msra.mxu0 %v147
  %507 = vmatprep.subr.mxu0 %v146
  %508 = vmatpush1.msra.mxu0 %v145
  %509 = vmatprep.subr.mxu0 %v144
  %510 = vmatpush1.msra.mxu0 %v143
  %511 = vmatprep.subr.mxu0 %v142
  %512 = vmatpush1.msra.mxu0 %v141
  %513 = vmatprep.subr.mxu0 %v140
  %514 = vmatpush1.msra.mxu0 %v139
  %515 = vmatprep.subr.mxu0 %v138
  %516 = vmatpush1.msra.mxu0 %v137
  %517 = vmatprep.subr.mxu0 %v136
  %518 = vmatpush1.msra.mxu0 %v135
  %519 = vmatprep.subr.mxu0 %v134
  %520 = vmatpush1.msra.mxu0 %v133
  %521 = vmatprep.subr.mxu0 %v132
  %522 = vmatpush1.msra.mxu0 %v131
  %523 = vmatprep.subr.mxu0 %v194
  %524 = vmatpush2.msra.mxu0 %v193
  %525 = vmatprep.subr.mxu0 %v192
  %526 = vmatpush2.msra.mxu0 %v191
  %527 = vmatprep.subr.mxu0 %v190
  %528 = vmatpush2.msra.mxu0 %v189
  %529 = vmatprep.subr.mxu0 %v188
  %530 = vmatpush2.msra.mxu0 %v187
  %531 = vmatprep.subr.mxu0 %v186
  %532 = vmatpush2.msra.mxu0 %v185
  %533 = vmatprep.subr.mxu0 %v184
  %534 = vmatpush2.msra.mxu0 %v183
  %535 = vmatprep.subr.mxu0 %v182
  %536 = vmatpush2.msra.mxu0 %v181
  %537 = vmatprep.subr.mxu0 %v180
  %538 = vmatpush2.msra.mxu0 %v179
  %539 = vmatprep.subr.mxu0 %v178
  %540 = vmatpush2.msra.mxu0 %v177
  %541 = vmatprep.subr.mxu0 %v176
  %542 = vmatpush2.msra.mxu0 %v175
  %543 = vmatprep.subr.mxu0 %v174
  %544 = vmatpush2.msra.mxu0 %v173
  %545 = vmatprep.subr.mxu0 %v172
  %546 = vmatpush2.msra.mxu0 %v171
  %547 = vmatprep.subr.mxu0 %v170
  %548 = vmatpush2.msra.mxu0 %v169
  %549 = vmatprep.subr.mxu0 %v168
  %550 = vmatpush2.msra.mxu0 %v167
  %551 = vmatprep.subr.mxu0 %v166
  %552 = vmatpush2.msra.mxu0 %v165
  %553 = vmatprep.subr.mxu0 %v164
  %554 = vmatpush2.msra.mxu0 %v163
  %555 = vmatprep.mubr.f32.mxu0 %v386
  %556 = vmatmul.mubr.f32.gmra.mxu0 %v384
  %v557 = vpop.f32.mrf.mxu0
  %v558 = vadd.f32 %v487, %v557
  %v559 = vpop.f32.mrf.mxu0
  %v560 = vadd.f32 %v489, %v559
  %561 = vdwg.mxu0
  %562 = vmatprep.subr.mxu0 %v226
  %563 = vmatpush1.msra.mxu0 %v225
  %564 = vmatprep.subr.mxu0 %v224
  %565 = vmatpush1.msra.mxu0 %v223
  %566 = vmatprep.subr.mxu0 %v222
  %567 = vmatpush1.msra.mxu0 %v221
  %568 = vmatprep.subr.mxu0 %v220
  %569 = vmatpush1.msra.mxu0 %v219
  %570 = vmatprep.subr.mxu0 %v218
  %571 = vmatpush1.msra.mxu0 %v217
  %572 = vmatprep.subr.mxu0 %v216
  %573 = vmatpush1.msra.mxu0 %v215
  %574 = vmatprep.subr.mxu0 %v214
  %575 = vmatpush1.msra.mxu0 %v213
  %576 = vmatprep.subr.mxu0 %v212
  %577 = vmatpush1.msra.mxu0 %v211
  %578 = vmatprep.subr.mxu0 %v210
  %579 = vmatpush1.msra.mxu0 %v209
  %580 = vmatprep.subr.mxu0 %v208
  %581 = vmatpush1.msra.mxu0 %v207
  %582 = vmatprep.subr.mxu0 %v206
  %583 = vmatpush1.msra.mxu0 %v205
  %584 = vmatprep.subr.mxu0 %v204
  %585 = vmatpush1.msra.mxu0 %v203
  %586 = vmatprep.subr.mxu0 %v202
  %587 = vmatpush1.msra.mxu0 %v201
  %588 = vmatprep.subr.mxu0 %v200
  %589 = vmatpush1.msra.mxu0 %v199
  %590 = vmatprep.subr.mxu0 %v198
  %591 = vmatpush1.msra.mxu0 %v197
  %592 = vmatprep.subr.mxu0 %v196
  %593 = vmatpush1.msra.mxu0 %v195
  %594 = vmatprep.subr.mxu0 %v258
  %595 = vmatpush2.msra.mxu0 %v257
  %596 = vmatprep.subr.mxu0 %v256
  %597 = vmatpush2.msra.mxu0 %v255
  %598 = vmatprep.subr.mxu0 %v254
  %599 = vmatpush2.msra.mxu0 %v253
  %600 = vmatprep.subr.mxu0 %v252
  %601 = vmatpush2.msra.mxu0 %v251
  %602 = vmatprep.subr.mxu0 %v250
  %603 = vmatpush2.msra.mxu0 %v249
  %604 = vmatprep.subr.mxu0 %v248
  %605 = vmatpush2.msra.mxu0 %v247
  %606 = vmatprep.subr.mxu0 %v246
  %607 = vmatpush2.msra.mxu0 %v245
  %608 = vmatprep.subr.mxu0 %v244
  %609 = vmatpush2.msra.mxu0 %v243
  %610 = vmatprep.subr.mxu0 %v242
  %611 = vmatpush2.msra.mxu0 %v241
  %612 = vmatprep.subr.mxu0 %v240
  %613 = vmatpush2.msra.mxu0 %v239
  %614 = vmatprep.subr.mxu0 %v238
  %615 = vmatpush2.msra.mxu0 %v237
  %616 = vmatprep.subr.mxu0 %v236
  %617 = vmatpush2.msra.mxu0 %v235
  %618 = vmatprep.subr.mxu0 %v234
  %619 = vmatpush2.msra.mxu0 %v233
  %620 = vmatprep.subr.mxu0 %v232
  %621 = vmatpush2.msra.mxu0 %v231
  %622 = vmatprep.subr.mxu0 %v230
  %623 = vmatpush2.msra.mxu0 %v229
  %624 = vmatprep.subr.mxu0 %v228
  %625 = vmatpush2.msra.mxu0 %v227
  %626 = vmatprep.mubr.f32.mxu0 %v402
  %627 = vmatmul.mubr.f32.gmra.mxu0 %v394
  %v628 = vpop.f32.mrf.mxu0
  %v629 = vadd.f32 %v558, %v628
  %v630 = vpop.f32.mrf.mxu0
  %v631 = vadd.f32 %v560, %v630
  %632 = vdwg.mxu0
  %633 = vmatprep.subr.mxu0 %v290
  %634 = vmatpush1.msra.mxu0 %v289
  %635 = vmatprep.subr.mxu0 %v288
  %636 = vmatpush1.msra.mxu0 %v287
  %637 = vmatprep.subr.mxu0 %v286
  %638 = vmatpush1.msra.mxu0 %v285
  %639 = vmatprep.subr.mxu0 %v284
  %640 = vmatpush1.msra.mxu0 %v283
  %641 = vmatprep.subr.mxu0 %v282
  %642 = vmatpush1.msra.mxu0 %v281
  %643 = vmatprep.subr.mxu0 %v280
  %644 = vmatpush1.msra.mxu0 %v279
  %645 = vmatprep.subr.mxu0 %v278
  %646 = vmatpush1.msra.mxu0 %v277
  %647 = vmatprep.subr.mxu0 %v276
  %648 = vmatpush1.msra.mxu0 %v275
  %649 = vmatprep.subr.mxu0 %v274
  %650 = vmatpush1.msra.mxu0 %v273
  %651 = vmatprep.subr.mxu0 %v272
  %652 = vmatpush1.msra.mxu0 %v271
  %653 = vmatprep.subr.mxu0 %v270
  %654 = vmatpush1.msra.mxu0 %v269
  %655 = vmatprep.subr.mxu0 %v268
  %656 = vmatpush1.msra.mxu0 %v267
  %657 = vmatprep.subr.mxu0 %v266
  %658 = vmatpush1.msra.mxu0 %v265
  %659 = vmatprep.subr.mxu0 %v264
  %660 = vmatpush1.msra.mxu0 %v263
  %661 = vmatprep.subr.mxu0 %v262
  %662 = vmatpush1.msra.mxu0 %v261
  %663 = vmatprep.subr.mxu0 %v260
  %664 = vmatpush1.msra.mxu0 %v259
  %665 = vmatprep.subr.mxu0 %v322
  %666 = vmatpush2.msra.mxu0 %v321
  %667 = vmatprep.subr.mxu0 %v320
  %668 = vmatpush2.msra.mxu0 %v319
  %669 = vmatprep.subr.mxu0 %v318
  %670 = vmatpush2.msra.mxu0 %v317
  %671 = vmatprep.subr.mxu0 %v316
  %672 = vmatpush2.msra.mxu0 %v315
  %673 = vmatprep.subr.mxu0 %v314
  %674 = vmatpush2.msra.mxu0 %v313
  %675 = vmatprep.subr.mxu0 %v312
  %676 = vmatpush2.msra.mxu0 %v311
  %677 = vmatprep.subr.mxu0 %v310
  %678 = vmatpush2.msra.mxu0 %v309
  %679 = vmatprep.subr.mxu0 %v308
  %680 = vmatpush2.msra.mxu0 %v307
  %681 = vmatprep.subr.mxu0 %v306
  %682 = vmatpush2.msra.mxu0 %v305
  %683 = vmatprep.subr.mxu0 %v304
  %684 = vmatpush2.msra.mxu0 %v303
  %685 = vmatprep.subr.mxu0 %v302
  %686 = vmatpush2.msra.mxu0 %v301
  %687 = vmatprep.subr.mxu0 %v300
  %688 = vmatpush2.msra.mxu0 %v299
  %689 = vmatprep.subr.mxu0 %v298
  %690 = vmatpush2.msra.mxu0 %v297
  %691 = vmatprep.subr.mxu0 %v296
  %692 = vmatpush2.msra.mxu0 %v295
  %693 = vmatprep.subr.mxu0 %v294
  %694 = vmatpush2.msra.mxu0 %v293
  %695 = vmatprep.subr.mxu0 %v292
  %696 = vmatpush2.msra.mxu0 %v291
  %697 = vmatprep.mubr.f32.mxu0 %v403
  %698 = vmatmul.mubr.f32.gmra.mxu0 %v401
  %v699 = vpop.f32.mrf.mxu0
  %v700 = vadd.f32 %v629, %v699
  %v701 = vpop.f32.mrf.mxu0
  %v702 = vadd.f32 %v631, %v701
  %703 = vdwg.mxu0
  %704 = vmatprep.subr.mxu0 %v354
  %705 = vmatpush1.msra.mxu0 %v353
  %706 = vmatprep.subr.mxu0 %v352
  %707 = vmatpush1.msra.mxu0 %v351
  %708 = vmatprep.subr.mxu0 %v350
  %709 = vmatpush1.msra.mxu0 %v349
  %710 = vmatprep.subr.mxu0 %v348
  %711 = vmatpush1.msra.mxu0 %v347
  %712 = vmatprep.subr.mxu0 %v346
  %713 = vmatpush1.msra.mxu0 %v345
  %714 = vmatprep.subr.mxu0 %v344
  %715 = vmatpush1.msra.mxu0 %v343
  %716 = vmatprep.subr.mxu0 %v342
  %717 = vmatpush1.msra.mxu0 %v341
  %718 = vmatprep.subr.mxu0 %v340
  %719 = vmatpush1.msra.mxu0 %v339
  %720 = vmatprep.subr.mxu0 %v338
  %721 = vmatpush1.msra.mxu0 %v337
  %722 = vmatprep.subr.mxu0 %v336
  %723 = vmatpush1.msra.mxu0 %v335
  %724 = vmatprep.subr.mxu0 %v334
  %725 = vmatpush1.msra.mxu0 %v333
  %726 = vmatprep.subr.mxu0 %v332
  %727 = vmatpush1.msra.mxu0 %v331
  %728 = vmatprep.subr.mxu0 %v330
  %729 = vmatpush1.msra.mxu0 %v329
  %730 = vmatprep.subr.mxu0 %v328
  %731 = vmatpush1.msra.mxu0 %v327
  %732 = vmatprep.subr.mxu0 %v326
  %733 = vmatpush1.msra.mxu0 %v325
  %734 = vmatprep.subr.mxu0 %v324
  %735 = vmatpush1.msra.mxu0 %v323
  %736 = vmatprep.subr.mxu0 0.0
  %737 = vmatpush2.msra.mxu0 0.0
  %738 = vmatprep.subr.mxu0 0.0
  %739 = vmatpush2.msra.mxu0 0.0
  %740 = vmatprep.subr.mxu0 0.0
  %741 = vmatpush2.msra.mxu0 0.0
  %742 = vmatprep.subr.mxu0 0.0
  %743 = vmatpush2.msra.mxu0 0.0
  %744 = vmatprep.subr.mxu0 0.0
  %745 = vmatpush2.msra.mxu0 0.0
  %746 = vmatprep.subr.mxu0 0.0
  %747 = vmatpush2.msra.mxu0 0.0
  %748 = vmatprep.subr.mxu0 0.0
  %749 = vmatpush2.msra.mxu0 0.0
  %750 = vmatprep.subr.mxu0 0.0
  %751 = vmatpush2.msra.mxu0 0.0
  %752 = vmatprep.subr.mxu0 0.0
  %753 = vmatpush2.msra.mxu0 0.0
  %754 = vmatprep.subr.mxu0 0.0
  %755 = vmatpush2.msra.mxu0 0.0
  %756 = vmatprep.subr.mxu0 0.0
  %757 = vmatpush2.msra.mxu0 0.0
  %758 = vmatprep.subr.mxu0 0.0
  %759 = vmatpush2.msra.mxu0 0.0
  %760 = vmatprep.subr.mxu0 0.0
  %761 = vmatpush2.msra.mxu0 0.0
  %762 = vmatprep.subr.mxu0 0.0
  %763 = vmatpush2.msra.mxu0 0.0
  %764 = vmatprep.subr.mxu0 0.0
  %765 = vmatpush2.msra.mxu0 0.0
  %766 = vmatprep.subr.mxu0 0.0
  %767 = vmatpush2.msra.mxu0 0.0
  %768 = vmatprep.mubr.f32.mxu0 0.0
  %769 = vmatmul.mubr.f32.gmra.mxu0 %v410
  %v770 = vpop.f32.mrf.mxu0
  %v771 = vadd.f32 %v700, %v770
  %v772 = vpop.f32.mrf.mxu0
  %v773 = vadd.f32 %v702, %v772
  %774 = vdwg.mxu0
  %v775 = vmax.f32 %v771, 0.0
  %v776 = vmax.f32 %v773, 0.0
  %v777 = vld [vmem:[%s4] sm:$0xff]
  %v778 = vld [vmem:[%s4 + $0x8] sm:$0xff]
  %v779 = vld [vmem:[%s4 + $0x10] sm:$0xff]
  %v780 = vld [vmem:[%s4 + $0x18] sm:$0xff]
  %v781 = vld [vmem:[%s4 + $0x20] sm:$0xff]
  %v782 = vld [vmem:[%s4 + $0x28] sm:$0xff]
  %v783 = vld [vmem:[%s4 + $0x30] sm:$0xff]
  %v784 = vld [vmem:[%s4 + $0x38] sm:$0xff]
  %v785 = vld [vmem:[%s4 + $0x40] sm:$0xff]
  %v786 = vld [vmem:[%s4 + $0x48] sm:$0xff]
  %v787 = vld [vmem:[%s4 + $0x50] sm:$0xff]
  %v788 = vld [vmem:[%s4 + $0x58] sm:$0xff]
  %v789 = vld [vmem:[%s4 + $0x60] sm:$0xff]
  %v790 = vld [vmem:[%s4 + $0x68] sm:$0xff]
  %v791 = vld [vmem:[%s4 + $0x70] sm:$0xff]
  %v792 = vld [vmem:[%s4 + $0x78] sm:$0xff]
  %v793 = vld [vmem:[%s4 + $0x80] sm:$0xff]
  %v794 = vld [vmem:[%s4 + $0x88] sm:$0xff]
  %v795 = vld [vmem:[%s4 + $0x90] sm:$0xff]
  %v796 = vld [vmem:[%s4 + $0x98] sm:$0xff]
  %v797 = vld [vmem:[%s4 + $0xa0] sm:$0xff]
  %v798 = vld [vmem:[%s4 + $0xa8] sm:$0xff]
  %v799 = vld [vmem:[%s4 + $0xb0] sm:$0xff]
  %v800 = vld [vmem:[%s4 + $0xb8] sm:$0xff]
  %v801 = vld [vmem:[%s4 + $0xc0] sm:$0xff]
  %v802 = vld [vmem:[%s4 + $0xc8] sm:$0xff]
  %v803 = vld [vmem:[%s4 + $0xd0] sm:$0xff]
  %v804 = vld [vmem:[%s4 + $0xd8] sm:$0xff]
  %v805 = vld [vmem:[%s4 + $0xe0] sm:$0xff]
  %v806 = vld [vmem:[%s4 + $0xe8] sm:$0xff]
  %v807 = vld [vmem:[%s4 + $0xf0] sm:$0xff]
  %v808 = vld [vmem:[%s4 + $0xf8] sm:$0xff]
  %v809 = vld [vmem:[%s5] sm:$0x1]
  %v811 = vlaneseq
  %v812 = vshrl.u32 %v811, 7
  %v813 = vsub.s32 0, %v812
  %v814 = vrot.slane %v809, %v813
  %816 = vmatprep.subr.mxu0 0.0
  %817 = vmatpush1.msra.mxu0 %v792
  %818 = vmatprep.subr.mxu0 0.0
  %819 = vmatpush1.msra.mxu0 %v791
  %820 = vmatprep.subr.mxu0 0.0
  %821 = vmatpush1.msra.mxu0 %v790
  %822 = vmatprep.subr.mxu0 0.0
  %823 = vmatpush1.msra.mxu0 %v789
  %824 = vmatprep.subr.mxu0 0.0
  %825 = vmatpush1.msra.mxu0 %v788
  %826 = vmatprep.subr.mxu0 0.0
  %827 = vmatpush1.msra.mxu0 %v787
  %828 = vmatprep.subr.mxu0 0.0
  %829 = vmatpush1.msra.mxu0 %v786
  %830 = vmatprep.subr.mxu0 0.0
  %831 = vmatpush1.msra.mxu0 %v785
  %832 = vmatprep.subr.mxu0 0.0
  %833 = vmatpush1.msra.mxu0 %v784
  %834 = vmatprep.subr.mxu0 0.0
  %835 = vmatpush1.msra.mxu0 %v783
  %836 = vmatprep.subr.mxu0 0.0
  %837 = vmatpush1.msra.mxu0 %v782
  %838 = vmatprep.subr.mxu0 0.0
  %839 = vmatpush1.msra.mxu0 %v781
  %840 = vmatprep.subr.mxu0 0.0
  %841 = vmatpush1.msra.mxu0 %v780
  %842 = vmatprep.subr.mxu0 0.0
  %843 = vmatpush1.msra.mxu0 %v779
  %844 = vmatprep.subr.mxu0 0.0
  %845 = vmatpush1.msra.mxu0 %v778
  %846 = vmatprep.subr.mxu0 0.0
  %847 = vmatpush1.msra.mxu0 %v777
  %848 = vmatprep.subr.mxu0 0.0
  %849 = vmatpush2.msra.mxu0 %v808
  %850 = vmatprep.subr.mxu0 0.0
  %851 = vmatpush2.msra.mxu0 %v807
  %852 = vmatprep.subr.mxu0 0.0
  %853 = vmatpush2.msra.mxu0 %v806
  %854 = vmatprep.subr.mxu0 0.0
  %855 = vmatpush2.msra.mxu0 %v805
  %856 = vmatprep.subr.mxu0 0.0
  %857 = vmatpush2.msra.mxu0 %v804
  %858 = vmatprep.subr.mxu0 0.0
  %859 = vmatpush2.msra.mxu0 %v803
  %860 = vmatprep.subr.mxu0 0.0
  %861 = vmatpush2.msra.mxu0 %v802
  %862 = vmatprep.subr.mxu0 0.0
  %863 = vmatpush2.msra.mxu0 %v801
  %864 = vmatprep.subr.mxu0 0.0
  %865 = vmatpush2.msra.mxu0 %v800
  %866 = vmatprep.subr.mxu0 0.0
  %867 = vmatpush2.msra.mxu0 %v799
  %868 = vmatprep.subr.mxu0 0.0
  %869 = vmatpush2.msra.mxu0 %v798
  %870 = vmatprep.subr.mxu0 0.0
  %871 = vmatpush2.msra.mxu0 %v797
  %872 = vmatprep.subr.mxu0 0.0
  %873 = vmatpush2.msra.mxu0 %v796
  %874 = vmatprep.subr.mxu0 0.0
  %875 = vmatpush2.msra.mxu0 %v795
  %876 = vmatprep.subr.mxu0 0.0
  %877 = vmatpush2.msra.mxu0 %v794
  %878 = vmatprep.subr.mxu0 0.0
  %879 = vmatpush2.msra.mxu0 %v793
  %880 = vmatprep.mubr.f32.mxu0 %v776
  %881 = vmatmul.mubr.f32.gmra.mxu0 %v775
  %v882 = vpop.f32.mrf.mxu0
  %v883 = vadd.f32 %v814, %v882
  %v884 = vpop.f32.mrf.mxu0
  %885 = vdwg.mxu0
  %v886 = vld [vmem:[%s6] sm:$0xff]
  %v887 = vld [vmem:[%s6 + $0x8] sm:$0xff]
  %v888 = vld [vmem:[%s6 + $0x10] sm:$0xff]
  %v889 = vld [vmem:[%s6 + $0x18] sm:$0xff]
  %v890 = vld [vmem:[%s6 + $0x20] sm:$0xff]
  %v891 = vld [vmem:[%s6 + $0x28] sm:$0xff]
  %v892 = vld [vmem:[%s6 + $0x30] sm:$0xff]
  %v893 = vld [vmem:[%s6 + $0x38] sm:$0xff]
  %v894 = vld [vmem:[%s6 + $0x40] sm:$0xff]
  %v895 = vld [vmem:[%s6 + $0x48] sm:$0xff]
  %v896 = vld [vmem:[%s6 + $0x50] sm:$0xff]
  %v897 = vld [vmem:[%s6 + $0x58] sm:$0xff]
  %v898 = vld [vmem:[%s6 + $0x60] sm:$0xff]
  %v899 = vld [vmem:[%s6 + $0x68] sm:$0xff]
  %v900 = vld [vmem:[%s6 + $0x70] sm:$0xff]
  %v901 = vld [vmem:[%s6 + $0x78] sm:$0xff]
  %v902 = vld [vmem:[%s6 + $0x80] sm:$0xff]
  %v903 = vld [vmem:[%s6 + $0x88] sm:$0xff]
  %v904 = vld [vmem:[%s6 + $0x90] sm:$0xff]
  %v905 = vld [vmem:[%s6 + $0x98] sm:$0xff]
  %v906 = vld [vmem:[%s6 + $0xa0] sm:$0xff]
  %v907 = vld [vmem:[%s6 + $0xa8] sm:$0xff]
  %v908 = vld [vmem:[%s6 + $0xb0] sm:$0xff]
  %v909 = vld [vmem:[%s6 + $0xb8] sm:$0xff]
  %v910 = vld [vmem:[%s6 + $0xc0] sm:$0xff]
  %v911 = vld [vmem:[%s6 + $0xc8] sm:$0xff]
  %v912 = vld [vmem:[%s6 + $0xd0] sm:$0xff]
  %v913 = vld [vmem:[%s6 + $0xd8] sm:$0xff]
  %v914 = vld [vmem:[%s6 + $0xe0] sm:$0xff]
  %v915 = vld [vmem:[%s6 + $0xe8] sm:$0xff]
  %v916 = vld [vmem:[%s6 + $0xf0] sm:$0xff]
  %v917 = vld [vmem:[%s6 + $0xf8] sm:$0xff]
  %v918 = vld [vmem:[%s7] sm:$0x1]
  %v920 = vlaneseq
  %v921 = vshrl.u32 %v920, 7
  %v922 = vsub.s32 0, %v921
  %v923 = vrot.slane %v918, %v922
  %925 = vmatprep.subr.mxu0 0.0
  %926 = vmatpush1.msra.mxu0 %v901
  %927 = vmatprep.subr.mxu0 0.0
  %928 = vmatpush1.msra.mxu0 %v900
  %929 = vmatprep.subr.mxu0 0.0
  %930 = vmatpush1.msra.mxu0 %v899
  %931 = vmatprep.subr.mxu0 0.0
  %932 = vmatpush1.msra.mxu0 %v898
  %933 = vmatprep.subr.mxu0 0.0
  %934 = vmatpush1.msra.mxu0 %v897
  %935 = vmatprep.subr.mxu0 0.0
  %936 = vmatpush1.msra.mxu0 %v896
  %937 = vmatprep.subr.mxu0 0.0
  %938 = vmatpush1.msra.mxu0 %v895
  %939 = vmatprep.subr.mxu0 0.0
  %940 = vmatpush1.msra.mxu0 %v894
  %941 = vmatprep.subr.mxu0 0.0
  %942 = vmatpush1.msra.mxu0 %v893
  %943 = vmatprep.subr.mxu0 0.0
  %944 = vmatpush1.msra.mxu0 %v892
  %945 = vmatprep.subr.mxu0 0.0
  %946 = vmatpush1.msra.mxu0 %v891
  %947 = vmatprep.subr.mxu0 0.0
  %948 = vmatpush1.msra.mxu0 %v890
  %949 = vmatprep.subr.mxu0 0.0
  %950 = vmatpush1.msra.mxu0 %v889
  %951 = vmatprep.subr.mxu0 0.0
  %952 = vmatpush1.msra.mxu0 %v888
  %953 = vmatprep.subr.mxu0 0.0
  %954 = vmatpush1.msra.mxu0 %v887
  %955 = vmatprep.subr.mxu0 0.0
  %956 = vmatpush1.msra.mxu0 %v886
  %957 = vmatprep.subr.mxu0 0.0
  %958 = vmatpush2.msra.mxu0 %v917
  %959 = vmatprep.subr.mxu0 0.0
  %960 = vmatpush2.msra.mxu0 %v916
  %961 = vmatprep.subr.mxu0 0.0
  %962 = vmatpush2.msra.mxu0 %v915
  %963 = vmatprep.subr.mxu0 0.0
  %964 = vmatpush2.msra.mxu0 %v914
  %965 = vmatprep.subr.mxu0 0.0
  %966 = vmatpush2.msra.mxu0 %v913
  %967 = vmatprep.subr.mxu0 0.0
  %968 = vmatpush2.msra.mxu0 %v912
  %969 = vmatprep.subr.mxu0 0.0
  %970 = vmatpush2.msra.mxu0 %v911
  %971 = vmatprep.subr.mxu0 0.0
  %972 = vmatpush2.msra.mxu0 %v910
  %973 = vmatprep.subr.mxu0 0.0
  %974 = vmatpush2.msra.mxu0 %v909
  %975 = vmatprep.subr.mxu0 0.0
  %976 = vmatpush2.msra.mxu0 %v908
  %977 = vmatprep.subr.mxu0 0.0
  %978 = vmatpush2.msra.mxu0 %v907
  %979 = vmatprep.subr.mxu0 0.0
  %980 = vmatpush2.msra.mxu0 %v906
  %981 = vmatprep.subr.mxu0 0.0
  %982 = vmatpush2.msra.mxu0 %v905
  %983 = vmatprep.subr.mxu0 0.0
  %984 = vmatpush2.msra.mxu0 %v904
  %985 = vmatprep.subr.mxu0 0.0
  %986 = vmatpush2.msra.mxu0 %v903
  %987 = vmatprep.subr.mxu0 0.0
  %988 = vmatpush2.msra.mxu0 %v902
  %989 = vmatprep.mubr.f32.mxu0 %v776
  %990 = vmatmul.mubr.f32.gmra.mxu0 %v775
  %v991 = vpop.f32.mrf.mxu0
  %v992 = vadd.f32 %v923, %v991
  %v993 = vpop.f32.mrf.mxu0
  %994 = vdwg.mxu0
  %v995 = vmul.f32 %v992, 0.5
  %v996 = vmul.f32 %v995, 1.442695
  %v997 = vpow.pop %v996
  %v998 = vld [vmem:[%s3] sm:$0x3]
  %v999 = vmul.f32 %v997, %v998
  %v1000 = vadd.f32 %v883, %v999
  %v1001 = vld [vmem:[%s8] sm:$0xff]
  %v1002 = vld [vmem:[%s8 + $0x8] sm:$0xff]
  %v1003 = vld [vmem:[%s8 + $0x10] sm:$0xff]
  %v1004 = vld [vmem:[%s8 + $0x18] sm:$0xff]
  %v1005 = vld [vmem:[%s8 + $0x20] sm:$0xff]
  %v1006 = vld [vmem:[%s8 + $0x28] sm:$0xff]
  %v1007 = vld [vmem:[%s8 + $0x30] sm:$0xff]
  %v1008 = vld [vmem:[%s8 + $0x38] sm:$0xff]
  %v1009 = vld [vmem:[%s8 + $0x40] sm:$0xff]
  %v1010 = vld [vmem:[%s8 + $0x48] sm:$0xff]
  %v1011 = vld [vmem:[%s8 + $0x50] sm:$0xff]
  %v1012 = vld [vmem:[%s8 + $0x58] sm:$0xff]
  %v1013 = vld [vmem:[%s9] sm:$0x1]
  %v1015 = vlaneseq
  %v1016 = vshrl.u32 %v1015, 7
  %v1017 = vsub.s32 0, %v1016
  %v1018 = vrot.slane %v1013, %v1017
  %vm1020 = vcmask 785408
  %v1022 = vsel %vm1020, %v1000, 0
  %1024 = vmatprep.subr.mxu0 0.0
  %1025 = vmatpush1.msra.mxu0 0.0
  %1026 = vmatprep.subr.mxu0 0.0
  %1027 = vmatpush1.msra.mxu0 0.0
  %1028 = vmatprep.subr.mxu0 0.0
  %1029 = vmatpush1.msra.mxu0 0.0
  %1030 = vmatprep.subr.mxu0 0.0
  %1031 = vmatpush1.msra.mxu0 0.0
  %1032 = vmatprep.subr.mxu0 0.0
  %1033 = vmatpush1.msra.mxu0 %v1012
  %1034 = vmatprep.subr.mxu0 0.0
  %1035 = vmatpush1.msra.mxu0 %v1011
  %1036 = vmatprep.subr.mxu0 0.0
  %1037 = vmatpush1.msra.mxu0 %v1010
  %1038 = vmatprep.subr.mxu0 0.0
  %1039 = vmatpush1.msra.mxu0 %v1009
  %1040 = vmatprep.subr.mxu0 0.0
  %1041 = vmatpush1.msra.mxu0 %v1008
  %1042 = vmatprep.subr.mxu0 0.0
  %1043 = vmatpush1.msra.mxu0 %v1007
  %1044 = vmatprep.subr.mxu0 0.0
  %1045 = vmatpush1.msra.mxu0 %v1006
  %1046 = vmatprep.subr.mxu0 0.0
  %1047 = vmatpush1.msra.mxu0 %v1005
  %1048 = vmatprep.subr.mxu0 0.0
  %1049 = vmatpush1.msra.mxu0 %v1004
  %1050 = vmatprep.subr.mxu0 0.0
  %1051 = vmatpush1.msra.mxu0 %v1003
  %1052 = vmatprep.subr.mxu0 0.0
  %1053 = vmatpush1.msra.mxu0 %v1002
  %1054 = vmatprep.subr.mxu0 0.0
  %1055 = vmatpush1.msra.mxu0 %v1001
  %1056 = vmatprep.subr.mxu0 0.0
  %1057 = vmatpush2.msra.mxu0 0.0
  %1058 = vmatprep.subr.mxu0 0.0
  %1059 = vmatpush2.msra.mxu0 0.0
  %1060 = vmatprep.subr.mxu0 0.0
  %1061 = vmatpush2.msra.mxu0 0.0
  %1062 = vmatprep.subr.mxu0 0.0
  %1063 = vmatpush2.msra.mxu0 0.0
  %1064 = vmatprep.subr.mxu0 0.0
  %1065 = vmatpush2.msra.mxu0 0.0
  %1066 = vmatprep.subr.mxu0 0.0
  %1067 = vmatpush2.msra.mxu0 0.0
  %1068 = vmatprep.subr.mxu0 0.0
  %1069 = vmatpush2.msra.mxu0 0.0
  %1070 = vmatprep.subr.mxu0 0.0
  %1071 = vmatpush2.msra.mxu0 0.0
  %1072 = vmatprep.subr.mxu0 0.0
  %1073 = vmatpush2.msra.mxu0 0.0
  %1074 = vmatprep.subr.mxu0 0.0
  %1075 = vmatpush2.msra.mxu0 0.0
  %1076 = vmatprep.subr.mxu0 0.0
  %1077 = vmatpush2.msra.mxu0 0.0
  %1078 = vmatprep.subr.mxu0 0.0
  %1079 = vmatpush2.msra.mxu0 0.0
  %1080 = vmatprep.subr.mxu0 0.0
  %1081 = vmatpush2.msra.mxu0 0.0
  %1082 = vmatprep.subr.mxu0 0.0
  %1083 = vmatpush2.msra.mxu0 0.0
  %1084 = vmatprep.subr.mxu0 0.0
  %1085 = vmatpush2.msra.mxu0 0.0
  %1086 = vmatprep.subr.mxu0 0.0
  %1087 = vmatpush2.msra.mxu0 0.0
  %1088 = vmatprep.mubr.f32.mxu0 0.0
  %1089 = vmatmul.mubr.f32.gmra.mxu0 %v1022
  %v1090 = vpop.f32.mrf.mxu0
  %v1091 = vadd.f32 %v1018, %v1090
  %v1092 = vpop.f32.mrf.mxu0
  %1093 = vdwg.mxu0
  %vm1094 = vcmask 189440
  %1095 = vst.msk [vmem:[%s19] sm:$0x3] %vm1094, %v1091
  %v1096 = vld [vmem:[%s10] sm:$0x3]
  %vm1097 = vcmp.ne.f32.partialorder %v1096, %v1096
  %v1098 = vsel %vm1097, 1, 0
  %v1099 = vcvt.s32.f32 %v1098
  %v1100 = vsel %vm1094, %v1099, -inf
  %1101 = vmax.xlane.f32.xlu0 %v1100
  %v1102 = vpop.xlane.xlu0 %1101
  %vm1103 = vcmask 1041408
  %v1104 = vsel %vm1103, %v1102, -inf
  %v1105 = vrot.slane %v1104, 4
  %v1106 = vmax.f32 %v1104, %v1105
  %v1107 = vrot.slane %v1106, 2
  %v1108 = vmax.f32 %v1106, %v1107
  %v1109 = vrot.slane %v1108, 1
  %v1110 = vmax.f32 %v1108, %v1109
  %vm1111 = vcmp.gt.f32.partialorder %v1110, 0.5
  %v1112 = vsel %vm1111, %v1091, %v1096
  %v1113 = vld [vmem:[%s11] sm:$0xff]
  %v1114 = vld [vmem:[%s11 + $0x8] sm:$0xff]
  %v1115 = vld [vmem:[%s11 + $0x10] sm:$0xff]
  %v1116 = vld [vmem:[%s12] sm:$0x1]
  %v1118 = vlaneseq
  %v1119 = vshrl.u32 %v1118, 7
  %v1120 = vsub.s32 0, %v1119
  %v1121 = vrot.slane %v1116, %v1120
  %vm1123 = vcmask 195584
  %v1125 = vsel %vm1123, %v1112, 0
  %1127 = vmatprep.subr.mxu0 0.0
  %1128 = vmatpush1.msra.mxu0 0.0
  %1129 = vmatprep.subr.mxu0 0.0
  %1130 = vmatpush1.msra.mxu0 0.0
  %1131 = vmatprep.subr.mxu0 0.0
  %1132 = vmatpush1.msra.mxu0 0.0
  %1133 = vmatprep.subr.mxu0 0.0
  %1134 = vmatpush1.msra.mxu0 0.0
  %1135 = vmatprep.subr.mxu0 0.0
  %1136 = vmatpush1.msra.mxu0 0.0
  %1137 = vmatprep.subr.mxu0 0.0
  %1138 = vmatpush1.msra.mxu0 0.0
  %1139 = vmatprep.subr.mxu0 0.0
  %1140 = vmatpush1.msra.mxu0 0.0
  %1141 = vmatprep.subr.mxu0 0.0
  %1142 = vmatpush1.msra.mxu0 0.0
  %1143 = vmatprep.subr.mxu0 0.0
  %1144 = vmatpush1.msra.mxu0 0.0
  %1145 = vmatprep.subr.mxu0 0.0
  %1146 = vmatpush1.msra.mxu0 0.0
  %1147 = vmatprep.subr.mxu0 0.0
  %1148 = vmatpush1.msra.mxu0 0.0
  %1149 = vmatprep.subr.mxu0 0.0
  %1150 = vmatpush1.msra.mxu0 0.0
  %1151 = vmatprep.subr.mxu0 0.0
  %1152 = vmatpush1.msra.mxu0 0.0
  %1153 = vmatprep.subr.mxu0 0.0
  %1154 = vmatpush1.msra.mxu0 %v1115
  %1155 = vmatprep.subr.mxu0 0.0
  %1156 = vmatpush1.msra.mxu0 %v1114
  %1157 = vmatprep.subr.mxu0 0.0
  %1158 = vmatpush1.msra.mxu0 %v1113
  %1159 = vmatprep.subr.mxu0 0.0
  %1160 = vmatpush2.msra.mxu0 0.0
  %1161 = vmatprep.subr.mxu0 0.0
  %1162 = vmatpush2.msra.mxu0 0.0
  %1163 = vmatprep.subr.mxu0 0.0
  %1164 = vmatpush2.msra.mxu0 0.0
  %1165 = vmatprep.subr.mxu0 0.0
  %1166 = vmatpush2.msra.mxu0 0.0
  %1167 = vmatprep.subr.mxu0 0.0
  %1168 = vmatpush2.msra.mxu0 0.0
  %1169 = vmatprep.subr.mxu0 0.0
  %1170 = vmatpush2.msra.mxu0 0.0
  %1171 = vmatprep.subr.mxu0 0.0
  %1172 = vmatpush2.msra.mxu0 0.0
  %1173 = vmatprep.subr.mxu0 0.0
  %1174 = vmatpush2.msra.mxu0 0.0
  %1175 = vmatprep.subr.mxu0 0.0
  %1176 = vmatpush2.msra.mxu0 0.0
  %1177 = vmatprep.subr.mxu0 0.0
  %1178 = vmatpush2.msra.mxu0 0.0
  %1179 = vmatprep.subr.mxu0 0.0
  %1180 = vmatpush2.msra.mxu0 0.0
  %1181 = vmatprep.subr.mxu0 0.0
  %1182 = vmatpush2.msra.mxu0 0.0
  %1183 = vmatprep.subr.mxu0 0.0
  %1184 = vmatpush2.msra.mxu0 0.0
  %1185 = vmatprep.subr.mxu0 0.0
  %1186 = vmatpush2.msra.mxu0 0.0
  %1187 = vmatprep.subr.mxu0 0.0
  %1188 = vmatpush2.msra.mxu0 0.0
  %1189 = vmatprep.subr.mxu0 0.0
  %1190 = vmatpush2.msra.mxu0 0.0
  %1191 = vmatprep.mubr.f32.mxu0 0.0
  %1192 = vmatmul.mubr.f32.gmra.mxu0 %v1125
  %v1193 = vpop.f32.mrf.mxu0
  %v1194 = vadd.f32 %v1121, %v1193
  %v1195 = vpop.f32.mrf.mxu0
  %1196 = vdwg.mxu0
  %v1197 = vmax.f32 %v1194, 0.0
  %v1198 = vld [vmem:[%s13] sm:$0xff]
  %v1199 = vld [vmem:[%s13 + $0x8] sm:$0xff]
  %v1200 = vld [vmem:[%s13 + $0x10] sm:$0xff]
  %v1201 = vld [vmem:[%s13 + $0x18] sm:$0xff]
  %v1202 = vld [vmem:[%s13 + $0x20] sm:$0xff]
  %v1203 = vld [vmem:[%s13 + $0x28] sm:$0xff]
  %v1204 = vld [vmem:[%s13 + $0x30] sm:$0xff]
  %v1205 = vld [vmem:[%s13 + $0x38] sm:$0xff]
  %v1206 = vld [vmem:[%s13 + $0x40] sm:$0xff]
  %v1207 = vld [vmem:[%s13 + $0x48] sm:$0xff]
  %v1208 = vld [vmem:[%s13 + $0x50] sm:$0xff]
  %v1209 = vld [vmem:[%s13 + $0x58] sm:$0xff]
  %v1210 = vld [vmem:[%s13 + $0x60] sm:$0xff]
  %v1211 = vld [vmem:[%s13 + $0x68] sm:$0xff]
  %v1212 = vld [vmem:[%s13 + $0x70] sm:$0xff]
  %v1213 = vld [vmem:[%s13 + $0x78] sm:$0xff]
  %v1214 = vld [vmem:[%s13 + $0x80] sm:$0xff]
  %v1215 = vld [vmem:[%s13 + $0x88] sm:$0xff]
  %v1216 = vld [vmem:[%s13 + $0x90] sm:$0xff]
  %v1217 = vld [vmem:[%s13 + $0x98] sm:$0xff]
  %v1218 = vld [vmem:[%s13 + $0xa0] sm:$0xff]
  %v1219 = vld [vmem:[%s13 + $0xa8] sm:$0xff]
  %v1220 = vld [vmem:[%s13 + $0xb0] sm:$0xff]
  %v1221 = vld [vmem:[%s13 + $0xb8] sm:$0xff]
  %v1222 = vld [vmem:[%s14] sm:$0x3]
  %v1224 = vlaneseq
  %v1225 = vshrl.u32 %v1224, 7
  %v1226 = vsub.s32 0, %v1225
  %v1227 = vrot.slane %v1222, %v1226
  %v1228 = vlaneseq
  %v1229 = vshrl.u32 %v1228, 7
  %v1230 = vsub.s32 1, %v1229
  %v1231 = vrot.slane %v1222, %v1230
  %v1235 = vsel %vm1020, %v1197, 0
  %1237 = vmatprep.subr.mxu0 0.0
  %1238 = vmatpush1.msra.mxu0 0.0
  %1239 = vmatprep.subr.mxu0 0.0
  %1240 = vmatpush1.msra.mxu0 0.0
  %1241 = vmatprep.subr.mxu0 0.0
  %1242 = vmatpush1.msra.mxu0 0.0
  %1243 = vmatprep.subr.mxu0 0.0
  %1244 = vmatpush1.msra.mxu0 0.0
  %1245 = vmatprep.subr.mxu0 %v1221
  %1246 = vmatpush1.msra.mxu0 %v1220
  %1247 = vmatprep.subr.mxu0 %v1219
  %1248 = vmatpush1.msra.mxu0 %v1218
  %1249 = vmatprep.subr.mxu0 %v1217
  %1250 = vmatpush1.msra.mxu0 %v1216
  %1251 = vmatprep.subr.mxu0 %v1215
  %1252 = vmatpush1.msra.mxu0 %v1214
  %1253 = vmatprep.subr.mxu0 %v1213
  %1254 = vmatpush1.msra.mxu0 %v1212
  %1255 = vmatprep.subr.mxu0 %v1211
  %1256 = vmatpush1.msra.mxu0 %v1210
  %1257 = vmatprep.subr.mxu0 %v1209
  %1258 = vmatpush1.msra.mxu0 %v1208
  %1259 = vmatprep.subr.mxu0 %v1207
  %1260 = vmatpush1.msra.mxu0 %v1206
  %1261 = vmatprep.subr.mxu0 %v1205
  %1262 = vmatpush1.msra.mxu0 %v1204
  %1263 = vmatprep.subr.mxu0 %v1203
  %1264 = vmatpush1.msra.mxu0 %v1202
  %1265 = vmatprep.subr.mxu0 %v1201
  %1266 = vmatpush1.msra.mxu0 %v1200
  %1267 = vmatprep.subr.mxu0 %v1199
  %1268 = vmatpush1.msra.mxu0 %v1198
  %1269 = vmatprep.subr.mxu0 0.0
  %1270 = vmatpush2.msra.mxu0 0.0
  %1271 = vmatprep.subr.mxu0 0.0
  %1272 = vmatpush2.msra.mxu0 0.0
  %1273 = vmatprep.subr.mxu0 0.0
  %1274 = vmatpush2.msra.mxu0 0.0
  %1275 = vmatprep.subr.mxu0 0.0
  %1276 = vmatpush2.msra.mxu0 0.0
  %1277 = vmatprep.subr.mxu0 0.0
  %1278 = vmatpush2.msra.mxu0 0.0
  %1279 = vmatprep.subr.mxu0 0.0
  %1280 = vmatpush2.msra.mxu0 0.0
  %1281 = vmatprep.subr.mxu0 0.0
  %1282 = vmatpush2.msra.mxu0 0.0
  %1283 = vmatprep.subr.mxu0 0.0
  %1284 = vmatpush2.msra.mxu0 0.0
  %1285 = vmatprep.subr.mxu0 0.0
  %1286 = vmatpush2.msra.mxu0 0.0
  %1287 = vmatprep.subr.mxu0 0.0
  %1288 = vmatpush2.msra.mxu0 0.0
  %1289 = vmatprep.subr.mxu0 0.0
  %1290 = vmatpush2.msra.mxu0 0.0
  %1291 = vmatprep.subr.mxu0 0.0
  %1292 = vmatpush2.msra.mxu0 0.0
  %1293 = vmatprep.subr.mxu0 0.0
  %1294 = vmatpush2.msra.mxu0 0.0
  %1295 = vmatprep.subr.mxu0 0.0
  %1296 = vmatpush2.msra.mxu0 0.0
  %1297 = vmatprep.subr.mxu0 0.0
  %1298 = vmatpush2.msra.mxu0 0.0
  %1299 = vmatprep.subr.mxu0 0.0
  %1300 = vmatpush2.msra.mxu0 0.0
  %1301 = vmatprep.mubr.f32.mxu0 0.0
  %1302 = vmatmul.mubr.f32.gmra.mxu0 %v1235
  %v1303 = vpop.f32.mrf.mxu0
  %v1304 = vadd.f32 %v1227, %v1303
  %v1305 = vpop.f32.mrf.mxu0
  %v1306 = vadd.f32 %v1231, %v1305
  %1307 = vdwg.mxu0
  %v1308 = vmul.f32 %v1304, 0.33333334
  %v1309 = vmul.f32 %v1306, 0.33333334
  %v1310 = vld [vmem:[%s15] sm:$0xff]
  %v1311 = vld [vmem:[%s15 + $0x8] sm:$0xff]
  %v1312 = vld [vmem:[%s15 + $0x10] sm:$0xff]
  %v1313 = vld [vmem:[%s15 + $0x18] sm:$0xff]
  %v1314 = vld [vmem:[%s15 + $0x20] sm:$0xff]
  %v1315 = vld [vmem:[%s15 + $0x28] sm:$0xff]
  %v1316 = vld [vmem:[%s15 + $0x30] sm:$0xff]
  %v1317 = vld [vmem:[%s15 + $0x38] sm:$0xff]
  %v1318 = vld [vmem:[%s15 + $0x40] sm:$0xff]
  %v1319 = vld [vmem:[%s15 + $0x48] sm:$0xff]
  %v1320 = vld [vmem:[%s15 + $0x50] sm:$0xff]
  %v1321 = vld [vmem:[%s15 + $0x58] sm:$0xff]
  %v1322 = vld [vmem:[%s15 + $0x60] sm:$0xff]
  %v1323 = vld [vmem:[%s15 + $0x68] sm:$0xff]
  %v1324 = vld [vmem:[%s15 + $0x70] sm:$0xff]
  %v1325 = vld [vmem:[%s15 + $0x78] sm:$0xff]
  %v1326 = vld [vmem:[%s15 + $0x80] sm:$0xff]
  %v1327 = vld [vmem:[%s15 + $0x88] sm:$0xff]
  %v1328 = vld [vmem:[%s15 + $0x90] sm:$0xff]
  %v1329 = vld [vmem:[%s15 + $0x98] sm:$0xff]
  %v1330 = vld [vmem:[%s15 + $0xa0] sm:$0xff]
  %v1331 = vld [vmem:[%s15 + $0xa8] sm:$0xff]
  %v1332 = vld [vmem:[%s15 + $0xb0] sm:$0xff]
  %v1333 = vld [vmem:[%s15 + $0xb8] sm:$0xff]
  %v1334 = vld [vmem:[%s15 + $0xc0] sm:$0xff]
  %v1335 = vld [vmem:[%s15 + $0xc8] sm:$0xff]
  %v1336 = vld [vmem:[%s15 + $0xd0] sm:$0xff]
  %v1337 = vld [vmem:[%s15 + $0xd8] sm:$0xff]
  %v1338 = vld [vmem:[%s15 + $0xe0] sm:$0xff]
  %v1339 = vld [vmem:[%s15 + $0xe8] sm:$0xff]
  %v1340 = vld [vmem:[%s15 + $0xf0] sm:$0xff]
  %v1341 = vld [vmem:[%s15 + $0xf8] sm:$0xff]
  %v1342 = vld [vmem:[%s16] sm:$0x1]
  %v1344 = vlaneseq
  %v1345 = vshrl.u32 %v1344, 7
  %v1346 = vsub.s32 0, %v1345
  %v1347 = vrot.slane %v1342, %v1346
  %1349 = vmatprep.subr.mxu0 0.0
  %1350 = vmatpush1.msra.mxu0 %v1325
  %1351 = vmatprep.subr.mxu0 0.0
  %1352 = vmatpush1.msra.mxu0 %v1324
  %1353 = vmatprep.subr.mxu0 0.0
  %1354 = vmatpush1.msra.mxu0 %v1323
  %1355 = vmatprep.subr.mxu0 0.0
  %1356 = vmatpush1.msra.mxu0 %v1322
  %1357 = vmatprep.subr.mxu0 0.0
  %1358 = vmatpush1.msra.mxu0 %v1321
  %1359 = vmatprep.subr.mxu0 0.0
  %1360 = vmatpush1.msra.mxu0 %v1320
  %1361 = vmatprep.subr.mxu0 0.0
  %1362 = vmatpush1.msra.mxu0 %v1319
  %1363 = vmatprep.subr.mxu0 0.0
  %1364 = vmatpush1.msra.mxu0 %v1318
  %1365 = vmatprep.subr.mxu0 0.0
  %1366 = vmatpush1.msra.mxu0 %v1317
  %1367 = vmatprep.subr.mxu0 0.0
  %1368 = vmatpush1.msra.mxu0 %v1316
  %1369 = vmatprep.subr.mxu0 0.0
  %1370 = vmatpush1.msra.mxu0 %v1315
  %1371 = vmatprep.subr.mxu0 0.0
  %1372 = vmatpush1.msra.mxu0 %v1314
  %1373 = vmatprep.subr.mxu0 0.0
  %1374 = vmatpush1.msra.mxu0 %v1313
  %1375 = vmatprep.subr.mxu0 0.0
  %1376 = vmatpush1.msra.mxu0 %v1312
  %1377 = vmatprep.subr.mxu0 0.0
  %1378 = vmatpush1.msra.mxu0 %v1311
  %1379 = vmatprep.subr.mxu0 0.0
  %1380 = vmatpush1.msra.mxu0 %v1310
  %1381 = vmatprep.subr.mxu0 0.0
  %1382 = vmatpush2.msra.mxu0 %v1341
  %1383 = vmatprep.subr.mxu0 0.0
  %1384 = vmatpush2.msra.mxu0 %v1340
  %1385 = vmatprep.subr.mxu0 0.0
  %1386 = vmatpush2.msra.mxu0 %v1339
  %1387 = vmatprep.subr.mxu0 0.0
  %1388 = vmatpush2.msra.mxu0 %v1338
  %1389 = vmatprep.subr.mxu0 0.0
  %1390 = vmatpush2.msra.mxu0 %v1337
  %1391 = vmatprep.subr.mxu0 0.0
  %1392 = vmatpush2.msra.mxu0 %v1336
  %1393 = vmatprep.subr.mxu0 0.0
  %1394 = vmatpush2.msra.mxu0 %v1335
  %1395 = vmatprep.subr.mxu0 0.0
  %1396 = vmatpush2.msra.mxu0 %v1334
  %1397 = vmatprep.subr.mxu0 0.0
  %1398 = vmatpush2.msra.mxu0 %v1333
  %1399 = vmatprep.subr.mxu0 0.0
  %1400 = vmatpush2.msra.mxu0 %v1332
  %1401 = vmatprep.subr.mxu0 0.0
  %1402 = vmatpush2.msra.mxu0 %v1331
  %1403 = vmatprep.subr.mxu0 0.0
  %1404 = vmatpush2.msra.mxu0 %v1330
  %1405 = vmatprep.subr.mxu0 0.0
  %1406 = vmatpush2.msra.mxu0 %v1329
  %1407 = vmatprep.subr.mxu0 0.0
  %1408 = vmatpush2.msra.mxu0 %v1328
  %1409 = vmatprep.subr.mxu0 0.0
  %1410 = vmatpush2.msra.mxu0 %v1327
  %1411 = vmatprep.subr.mxu0 0.0
  %1412 = vmatpush2.msra.mxu0 %v1326
  %1413 = vmatprep.mubr.f32.mxu0 %v1309
  %1414 = vmatmul.mubr.f32.gmra.mxu0 %v1308
  %v1415 = vpop.f32.mrf.mxu0
  %v1416 = vadd.f32 %v1347, %v1415
  %v1417 = vpop.f32.mrf.mxu0
  %1418 = vdwg.mxu0
  %v1419 = vmax.f32 %v1416, 0.0
  %v1420 = vld [vmem:[%s17] sm:$0xff]
  %v1421 = vld [vmem:[%s17 + $0x8] sm:$0xff]
  %v1422 = vld [vmem:[%s17 + $0x10] sm:$0xff]
  %v1423 = vld [vmem:[%s17 + $0x18] sm:$0xff]
  %v1424 = vld [vmem:[%s17 + $0x20] sm:$0xff]
  %v1425 = vld [vmem:[%s17 + $0x28] sm:$0xff]
  %v1426 = vld [vmem:[%s17 + $0x30] sm:$0xff]
  %v1427 = vld [vmem:[%s17 + $0x38] sm:$0xff]
  %v1428 = vld [vmem:[%s17 + $0x40] sm:$0xff]
  %v1429 = vld [vmem:[%s17 + $0x48] sm:$0xff]
  %v1430 = vld [vmem:[%s17 + $0x50] sm:$0xff]
  %v1431 = vld [vmem:[%s17 + $0x58] sm:$0xff]
  %v1432 = vld [vmem:[%s17 + $0x60] sm:$0xff]
  %v1433 = vld [vmem:[%s17 + $0x68] sm:$0xff]
  %v1434 = vld [vmem:[%s17 + $0x70] sm:$0xff]
  %v1435 = vld [vmem:[%s17 + $0x78] sm:$0xff]
  %v1436 = vld [vmem:[%s17 + $0x80] sm:$0xff]
  %v1437 = vld [vmem:[%s17 + $0x88] sm:$0xff]
  %v1438 = vld [vmem:[%s17 + $0x90] sm:$0xff]
  %v1439 = vld [vmem:[%s17 + $0x98] sm:$0xff]
  %v1440 = vld [vmem:[%s17 + $0xa0] sm:$0xff]
  %v1441 = vld [vmem:[%s17 + $0xa8] sm:$0xff]
  %v1442 = vld [vmem:[%s17 + $0xb0] sm:$0xff]
  %v1443 = vld [vmem:[%s17 + $0xb8] sm:$0xff]
  %v1444 = vld [vmem:[%s17 + $0xc0] sm:$0xff]
  %v1445 = vld [vmem:[%s17 + $0xc8] sm:$0xff]
  %v1446 = vld [vmem:[%s17 + $0xd0] sm:$0xff]
  %v1447 = vld [vmem:[%s17 + $0xd8] sm:$0xff]
  %v1448 = vld [vmem:[%s17 + $0xe0] sm:$0xff]
  %v1449 = vld [vmem:[%s17 + $0xe8] sm:$0xff]
  %v1450 = vld [vmem:[%s17 + $0xf0] sm:$0xff]
  %v1451 = vld [vmem:[%s17 + $0xf8] sm:$0xff]
  %v1452 = vld [vmem:[%s17 + $0x100] sm:$0xff]
  %v1453 = vld [vmem:[%s17 + $0x108] sm:$0xff]
  %v1454 = vld [vmem:[%s17 + $0x110] sm:$0xff]
  %v1455 = vld [vmem:[%s17 + $0x118] sm:$0xff]
  %v1456 = vld [vmem:[%s17 + $0x120] sm:$0xff]
  %v1457 = vld [vmem:[%s17 + $0x128] sm:$0xff]
  %v1458 = vld [vmem:[%s17 + $0x130] sm:$0xff]
  %v1459 = vld [vmem:[%s17 + $0x138] sm:$0xff]
  %v1460 = vld [vmem:[%s17 + $0x140] sm:$0xff]
  %v1461 = vld [vmem:[%s17 + $0x148] sm:$0xff]
  %v1462 = vld [vmem:[%s17 + $0x150] sm:$0xff]
  %v1463 = vld [vmem:[%s17 + $0x158] sm:$0xff]
  %v1464 = vld [vmem:[%s17 + $0x160] sm:$0xff]
  %v1465 = vld [vmem:[%s17 + $0x168] sm:$0xff]
  %v1466 = vld [vmem:[%s17 + $0x170] sm:$0xff]
  %v1467 = vld [vmem:[%s17 + $0x178] sm:$0xff]
  %v1468 = vld [vmem:[%s17 + $0x180] sm:$0xff]
  %v1469 = vld [vmem:[%s17 + $0x188] sm:$0xff]
  %v1470 = vld [vmem:[%s17 + $0x190] sm:$0xff]
  %v1471 = vld [vmem:[%s17 + $0x198] sm:$0xff]
  %v1472 = vld [vmem:[%s17 + $0x1a0] sm:$0xff]
  %v1473 = vld [vmem:[%s17 + $0x1a8] sm:$0xff]
  %v1474 = vld [vmem:[%s17 + $0x1b0] sm:$0xff]
  %v1475 = vld [vmem:[%s17 + $0x1b8] sm:$0xff]
  %v1476 = vld [vmem:[%s17 + $0x1c0] sm:$0xff]
  %v1477 = vld [vmem:[%s17 + $0x1c8] sm:$0xff]
  %v1478 = vld [vmem:[%s17 + $0x1d0] sm:$0xff]
  %v1479 = vld [vmem:[%s17 + $0x1d8] sm:$0xff]
  %v1480 = vld [vmem:[%s17 + $0x1e0] sm:$0xff]
  %v1481 = vld [vmem:[%s17 + $0x1e8] sm:$0xff]
  %v1482 = vld [vmem:[%s17 + $0x1f0] sm:$0xff]
  %v1483 = vld [vmem:[%s17 + $0x1f8] sm:$0xff]
  %v1484 = vld [vmem:[%s17 + $0x200] sm:$0xff]
  %v1485 = vld [vmem:[%s17 + $0x208] sm:$0xff]
  %v1486 = vld [vmem:[%s17 + $0x210] sm:$0xff]
  %v1487 = vld [vmem:[%s17 + $0x218] sm:$0xff]
  %v1488 = vld [vmem:[%s17 + $0x220] sm:$0xff]
  %v1489 = vld [vmem:[%s17 + $0x228] sm:$0xff]
  %v1490 = vld [vmem:[%s17 + $0x230] sm:$0xff]
  %v1491 = vld [vmem:[%s17 + $0x238] sm:$0xff]
  %v1492 = vld [vmem:[%s17 + $0x240] sm:$0xff]
  %v1493 = vld [vmem:[%s17 + $0x248] sm:$0xff]
  %v1494 = vld [vmem:[%s17 + $0x250] sm:$0xff]
  %v1495 = vld [vmem:[%s17 + $0x258] sm:$0xff]
  %v1496 = vld [vmem:[%s17 + $0x260] sm:$0xff]
  %v1497 = vld [vmem:[%s17 + $0x268] sm:$0xff]
  %v1498 = vld [vmem:[%s17 + $0x270] sm:$0xff]
  %v1499 = vld [vmem:[%s17 + $0x278] sm:$0xff]
  %v1500 = vld [vmem:[%s17 + $0x280] sm:$0xff]
  %v1501 = vld [vmem:[%s17 + $0x288] sm:$0xff]
  %v1502 = vld [vmem:[%s17 + $0x290] sm:$0xff]
  %v1503 = vld [vmem:[%s17 + $0x298] sm:$0xff]
  %v1504 = vld [vmem:[%s17 + $0x2a0] sm:$0xff]
  %v1505 = vld [vmem:[%s17 + $0x2a8] sm:$0xff]
  %v1506 = vld [vmem:[%s17 + $0x2b0] sm:$0xff]
  %v1507 = vld [vmem:[%s17 + $0x2b8] sm:$0xff]
  %v1508 = vld [vmem:[%s17 + $0x2c0] sm:$0xff]
  %v1509 = vld [vmem:[%s17 + $0x2c8] sm:$0xff]
  %v1510 = vld [vmem:[%s17 + $0x2d0] sm:$0xff]
  %v1511 = vld [vmem:[%s17 + $0x2d8] sm:$0xff]
  %v1512 = vld [vmem:[%s17 + $0x2e0] sm:$0xff]
  %v1513 = vld [vmem:[%s17 + $0x2e8] sm:$0xff]
  %v1514 = vld [vmem:[%s17 + $0x2f0] sm:$0xff]
  %v1515 = vld [vmem:[%s17 + $0x2f8] sm:$0xff]
  %v1516 = vld [vmem:[%s17 + $0x300] sm:$0xff]
  %v1517 = vld [vmem:[%s17 + $0x308] sm:$0xff]
  %v1518 = vld [vmem:[%s17 + $0x310] sm:$0xff]
  %v1519 = vld [vmem:[%s17 + $0x318] sm:$0xff]
  %v1520 = vld [vmem:[%s17 + $0x320] sm:$0xff]
  %v1521 = vld [vmem:[%s17 + $0x328] sm:$0xff]
  %v1522 = vld [vmem:[%s17 + $0x330] sm:$0xff]
  %v1523 = vld [vmem:[%s17 + $0x338] sm:$0xff]
  %v1524 = vld [vmem:[%s17 + $0x340] sm:$0xff]
  %v1525 = vld [vmem:[%s17 + $0x348] sm:$0xff]
  %v1526 = vld [vmem:[%s17 + $0x350] sm:$0xff]
  %v1527 = vld [vmem:[%s17 + $0x358] sm:$0xff]
  %v1528 = vld [vmem:[%s17 + $0x360] sm:$0xff]
  %v1529 = vld [vmem:[%s17 + $0x368] sm:$0xff]
  %v1530 = vld [vmem:[%s17 + $0x370] sm:$0xff]
  %v1531 = vld [vmem:[%s17 + $0x378] sm:$0xff]
  %v1532 = vld [vmem:[%s17 + $0x380] sm:$0xff]
  %v1533 = vld [vmem:[%s17 + $0x388] sm:$0xff]
  %v1534 = vld [vmem:[%s17 + $0x390] sm:$0xff]
  %v1535 = vld [vmem:[%s17 + $0x398] sm:$0xff]
  %v1536 = vld [vmem:[%s17 + $0x3a0] sm:$0xff]
  %v1537 = vld [vmem:[%s17 + $0x3a8] sm:$0xff]
  %v1538 = vld [vmem:[%s17 + $0x3b0] sm:$0xff]
  %v1539 = vld [vmem:[%s17 + $0x3b8] sm:$0xff]
  %v1540 = vld [vmem:[%s17 + $0x3c0] sm:$0xff]
  %v1541 = vld [vmem:[%s17 + $0x3c8] sm:$0xff]
  %v1542 = vld [vmem:[%s17 + $0x3d0] sm:$0xff]
  %v1543 = vld [vmem:[%s17 + $0x3d8] sm:$0xff]
  %v1544 = vld [vmem:[%s17 + $0x3e0] sm:$0xff]
  %v1545 = vld [vmem:[%s17 + $0x3e8] sm:$0xff]
  %v1546 = vld [vmem:[%s17 + $0x3f0] sm:$0xff]
  %v1547 = vld [vmem:[%s17 + $0x3f8] sm:$0xff]
  %v1548 = vld [vmem:[%s18] sm:$0xff]
  %v1550 = vlaneseq
  %v1551 = vshrl.u32 %v1550, 7
  %v1552 = vsub.s32 0, %v1551
  %v1553 = vrot.slane %v1548, %v1552
  %v1554 = vlaneseq
  %v1555 = vshrl.u32 %v1554, 7
  %v1556 = vsub.s32 1, %v1555
  %v1557 = vrot.slane %v1548, %v1556
  %v1558 = vlaneseq
  %v1559 = vshrl.u32 %v1558, 7
  %v1560 = vsub.s32 2, %v1559
  %v1561 = vrot.slane %v1548, %v1560
  %v1562 = vlaneseq
  %v1563 = vshrl.u32 %v1562, 7
  %v1564 = vsub.s32 3, %v1563
  %v1565 = vrot.slane %v1548, %v1564
  %v1566 = vlaneseq
  %v1567 = vshrl.u32 %v1566, 7
  %v1568 = vsub.s32 4, %v1567
  %v1569 = vrot.slane %v1548, %v1568
  %v1570 = vlaneseq
  %v1571 = vshrl.u32 %v1570, 7
  %v1572 = vsub.s32 5, %v1571
  %v1573 = vrot.slane %v1548, %v1572
  %v1574 = vlaneseq
  %v1575 = vshrl.u32 %v1574, 7
  %v1576 = vsub.s32 6, %v1575
  %v1577 = vrot.slane %v1548, %v1576
  %v1578 = vlaneseq
  %v1579 = vshrl.u32 %v1578, 7
  %v1580 = vsub.s32 7, %v1579
  %v1581 = vrot.slane %v1548, %v1580
  %1590 = vmatprep.subr.mxu0 %v1541
  %1591 = vmatpush1.msra.mxu0 %v1540
  %1592 = vmatprep.subr.mxu0 %v1533
  %1593 = vmatpush1.msra.mxu0 %v1532
  %1594 = vmatprep.subr.mxu0 %v1525
  %1595 = vmatpush1.msra.mxu0 %v1524
  %1596 = vmatprep.subr.mxu0 %v1517
  %1597 = vmatpush1.msra.mxu0 %v1516
  %1598 = vmatprep.subr.mxu0 %v1509
  %1599 = vmatpush1.msra.mxu0 %v1508
  %1600 = vmatprep.subr.mxu0 %v1501
  %1601 = vmatpush1.msra.mxu0 %v1500
  %1602 = vmatprep.subr.mxu0 %v1493
  %1603 = vmatpush1.msra.mxu0 %v1492
  %1604 = vmatprep.subr.mxu0 %v1485
  %1605 = vmatpush1.msra.mxu0 %v1484
  %1606 = vmatprep.subr.mxu0 %v1477
  %1607 = vmatpush1.msra.mxu0 %v1476
  %1608 = vmatprep.subr.mxu0 %v1469
  %1609 = vmatpush1.msra.mxu0 %v1468
  %1610 = vmatprep.subr.mxu0 %v1461
  %1611 = vmatpush1.msra.mxu0 %v1460
  %1612 = vmatprep.subr.mxu0 %v1453
  %1613 = vmatpush1.msra.mxu0 %v1452
  %1614 = vmatprep.subr.mxu0 %v1445
  %1615 = vmatpush1.msra.mxu0 %v1444
  %1616 = vmatprep.subr.mxu0 %v1437
  %1617 = vmatpush1.msra.mxu0 %v1436
  %1618 = vmatprep.subr.mxu0 %v1429
  %1619 = vmatpush1.msra.mxu0 %v1428
  %1620 = vmatprep.subr.mxu0 %v1421
  %1621 = vmatpush1.msra.mxu0 %v1420
  %1622 = vmatprep.subr.mxu0 0.0
  %1623 = vmatpush2.msra.mxu0 0.0
  %1624 = vmatprep.subr.mxu0 0.0
  %1625 = vmatpush2.msra.mxu0 0.0
  %1626 = vmatprep.subr.mxu0 0.0
  %1627 = vmatpush2.msra.mxu0 0.0
  %1628 = vmatprep.subr.mxu0 0.0
  %1629 = vmatpush2.msra.mxu0 0.0
  %1630 = vmatprep.subr.mxu0 0.0
  %1631 = vmatpush2.msra.mxu0 0.0
  %1632 = vmatprep.subr.mxu0 0.0
  %1633 = vmatpush2.msra.mxu0 0.0
  %1634 = vmatprep.subr.mxu0 0.0
  %1635 = vmatpush2.msra.mxu0 0.0
  %1636 = vmatprep.subr.mxu0 0.0
  %1637 = vmatpush2.msra.mxu0 0.0
  %1638 = vmatprep.subr.mxu0 0.0
  %1639 = vmatpush2.msra.mxu0 0.0
  %1640 = vmatprep.subr.mxu0 0.0
  %1641 = vmatpush2.msra.mxu0 0.0
  %1642 = vmatprep.subr.mxu0 0.0
  %1643 = vmatpush2.msra.mxu0 0.0
  %1644 = vmatprep.subr.mxu0 0.0
  %1645 = vmatpush2.msra.mxu0 0.0
  %1646 = vmatprep.subr.mxu0 0.0
  %1647 = vmatpush2.msra.mxu0 0.0
  %1648 = vmatprep.subr.mxu0 0.0
  %1649 = vmatpush2.msra.mxu0 0.0
  %1650 = vmatprep.subr.mxu0 0.0
  %1651 = vmatpush2.msra.mxu0 0.0
  %1652 = vmatprep.subr.mxu0 0.0
  %1653 = vmatpush2.msra.mxu0 0.0
  %1654 = vmatprep.mubr.f32.mxu0 0.0
  %1655 = vmatmul.mubr.f32.gmra.mxu0 %v1419
  %v1656 = vpop.f32.mrf.mxu0
  %v1657 = vadd.f32 %v1553, %v1656
  %v1658 = vpop.f32.mrf.mxu0
  %v1659 = vadd.f32 %v1557, %v1658
  %1660 = vdwg.mxu0
  %1661 = vmatprep.subr.mxu0 %v1543
  %1662 = vmatpush1.msra.mxu0 %v1542
  %1663 = vmatprep.subr.mxu0 %v1535
  %1664 = vmatpush1.msra.mxu0 %v1534
  %1665 = vmatprep.subr.mxu0 %v1527
  %1666 = vmatpush1.msra.mxu0 %v1526
  %1667 = vmatprep.subr.mxu0 %v1519
  %1668 = vmatpush1.msra.mxu0 %v1518
  %1669 = vmatprep.subr.mxu0 %v1511
  %1670 = vmatpush1.msra.mxu0 %v1510
  %1671 = vmatprep.subr.mxu0 %v1503
  %1672 = vmatpush1.msra.mxu0 %v1502
  %1673 = vmatprep.subr.mxu0 %v1495
  %1674 = vmatpush1.msra.mxu0 %v1494
  %1675 = vmatprep.subr.mxu0 %v1487
  %1676 = vmatpush1.msra.mxu0 %v1486
  %1677 = vmatprep.subr.mxu0 %v1479
  %1678 = vmatpush1.msra.mxu0 %v1478
  %1679 = vmatprep.subr.mxu0 %v1471
  %1680 = vmatpush1.msra.mxu0 %v1470
  %1681 = vmatprep.subr.mxu0 %v1463
  %1682 = vmatpush1.msra.mxu0 %v1462
  %1683 = vmatprep.subr.mxu0 %v1455
  %1684 = vmatpush1.msra.mxu0 %v1454
  %1685 = vmatprep.subr.mxu0 %v1447
  %1686 = vmatpush1.msra.mxu0 %v1446
  %1687 = vmatprep.subr.mxu0 %v1439
  %1688 = vmatpush1.msra.mxu0 %v1438
  %1689 = vmatprep.subr.mxu0 %v1431
  %1690 = vmatpush1.msra.mxu0 %v1430
  %1691 = vmatprep.subr.mxu0 %v1423
  %1692 = vmatpush1.msra.mxu0 %v1422
  %1693 = vmatprep.subr.mxu0 0.0
  %1694 = vmatpush2.msra.mxu0 0.0
  %1695 = vmatprep.subr.mxu0 0.0
  %1696 = vmatpush2.msra.mxu0 0.0
  %1697 = vmatprep.subr.mxu0 0.0
  %1698 = vmatpush2.msra.mxu0 0.0
  %1699 = vmatprep.subr.mxu0 0.0
  %1700 = vmatpush2.msra.mxu0 0.0
  %1701 = vmatprep.subr.mxu0 0.0
  %1702 = vmatpush2.msra.mxu0 0.0
  %1703 = vmatprep.subr.mxu0 0.0
  %1704 = vmatpush2.msra.mxu0 0.0
  %1705 = vmatprep.subr.mxu0 0.0
  %1706 = vmatpush2.msra.mxu0 0.0
  %1707 = vmatprep.subr.mxu0 0.0
  %1708 = vmatpush2.msra.mxu0 0.0
  %1709 = vmatprep.subr.mxu0 0.0
  %1710 = vmatpush2.msra.mxu0 0.0
  %1711 = vmatprep.subr.mxu0 0.0
  %1712 = vmatpush2.msra.mxu0 0.0
  %1713 = vmatprep.subr.mxu0 0.0
  %1714 = vmatpush2.msra.mxu0 0.0
  %1715 = vmatprep.subr.mxu0 0.0
  %1716 = vmatpush2.msra.mxu0 0.0
  %1717 = vmatprep.subr.mxu0 0.0
  %1718 = vmatpush2.msra.mxu0 0.0
  %1719 = vmatprep.subr.mxu0 0.0
  %1720 = vmatpush2.msra.mxu0 0.0
  %1721 = vmatprep.subr.mxu0 0.0
  %1722 = vmatpush2.msra.mxu0 0.0
  %1723 = vmatprep.subr.mxu0 0.0
  %1724 = vmatpush2.msra.mxu0 0.0
  %1725 = vmatprep.mubr.f32.mxu0 0.0
  %1726 = vmatmul.mubr.f32.gmra.mxu0 %v1419
  %v1727 = vpop.f32.mrf.mxu0
  %v1728 = vadd.f32 %v1561, %v1727
  %v1729 = vpop.f32.mrf.mxu0
  %v1730 = vadd.f32 %v1565, %v1729
  %1731 = vdwg.mxu0
  %1732 = vmatprep.subr.mxu0 %v1545
  %1733 = vmatpush1.msra.mxu0 %v1544
  %1734 = vmatprep.subr.mxu0 %v1537
  %1735 = vmatpush1.msra.mxu0 %v1536
  %1736 = vmatprep.subr.mxu0 %v1529
  %1737 = vmatpush1.msra.mxu0 %v1528
  %1738 = vmatprep.subr.mxu0 %v1521
  %1739 = vmatpush1.msra.mxu0 %v1520
  %1740 = vmatprep.subr.mxu0 %v1513
  %1741 = vmatpush1.msra.mxu0 %v1512
  %1742 = vmatprep.subr.mxu0 %v1505
  %1743 = vmatpush1.msra.mxu0 %v1504
  %1744 = vmatprep.subr.mxu0 %v1497
  %1745 = vmatpush1.msra.mxu0 %v1496
  %1746 = vmatprep.subr.mxu0 %v1489
  %1747 = vmatpush1.msra.mxu0 %v1488
  %1748 = vmatprep.subr.mxu0 %v1481
  %1749 = vmatpush1.msra.mxu0 %v1480
  %1750 = vmatprep.subr.mxu0 %v1473
  %1751 = vmatpush1.msra.mxu0 %v1472
  %1752 = vmatprep.subr.mxu0 %v1465
  %1753 = vmatpush1.msra.mxu0 %v1464
  %1754 = vmatprep.subr.mxu0 %v1457
  %1755 = vmatpush1.msra.mxu0 %v1456
  %1756 = vmatprep.subr.mxu0 %v1449
  %1757 = vmatpush1.msra.mxu0 %v1448
  %1758 = vmatprep.subr.mxu0 %v1441
  %1759 = vmatpush1.msra.mxu0 %v1440
  %1760 = vmatprep.subr.mxu0 %v1433
  %1761 = vmatpush1.msra.mxu0 %v1432
  %1762 = vmatprep.subr.mxu0 %v1425
  %1763 = vmatpush1.msra.mxu0 %v1424
  %1764 = vmatprep.subr.mxu0 0.0
  %1765 = vmatpush2.msra.mxu0 0.0
  %1766 = vmatprep.subr.mxu0 0.0
  %1767 = vmatpush2.msra.mxu0 0.0
  %1768 = vmatprep.subr.mxu0 0.0
  %1769 = vmatpush2.msra.mxu0 0.0
  %1770 = vmatprep.subr.mxu0 0.0
  %1771 = vmatpush2.msra.mxu0 0.0
  %1772 = vmatprep.subr.mxu0 0.0
  %1773 = vmatpush2.msra.mxu0 0.0
  %1774 = vmatprep.subr.mxu0 0.0
  %1775 = vmatpush2.msra.mxu0 0.0
  %1776 = vmatprep.subr.mxu0 0.0
  %1777 = vmatpush2.msra.mxu0 0.0
  %1778 = vmatprep.subr.mxu0 0.0
  %1779 = vmatpush2.msra.mxu0 0.0
  %1780 = vmatprep.subr.mxu0 0.0
  %1781 = vmatpush2.msra.mxu0 0.0
  %1782 = vmatprep.subr.mxu0 0.0
  %1783 = vmatpush2.msra.mxu0 0.0
  %1784 = vmatprep.subr.mxu0 0.0
  %1785 = vmatpush2.msra.mxu0 0.0
  %1786 = vmatprep.subr.mxu0 0.0
  %1787 = vmatpush2.msra.mxu0 0.0
  %1788 = vmatprep.subr.mxu0 0.0
  %1789 = vmatpush2.msra.mxu0 0.0
  %1790 = vmatprep.subr.mxu0 0.0
  %1791 = vmatpush2.msra.mxu0 0.0
  %1792 = vmatprep.subr.mxu0 0.0
  %1793 = vmatpush2.msra.mxu0 0.0
  %1794 = vmatprep.subr.mxu0 0.0
  %1795 = vmatpush2.msra.mxu0 0.0
  %1796 = vmatprep.mubr.f32.mxu0 0.0
  %1797 = vmatmul.mubr.f32.gmra.mxu0 %v1419
  %v1798 = vpop.f32.mrf.mxu0
  %v1799 = vadd.f32 %v1569, %v1798
  %v1800 = vpop.f32.mrf.mxu0
  %v1801 = vadd.f32 %v1573, %v1800
  %1802 = vdwg.mxu0
  %1803 = vmatprep.subr.mxu0 %v1547
  %1804 = vmatpush1.msra.mxu0 %v1546
  %1805 = vmatprep.subr.mxu0 %v1539
  %1806 = vmatpush1.msra.mxu0 %v1538
  %1807 = vmatprep.subr.mxu0 %v1531
  %1808 = vmatpush1.msra.mxu0 %v1530
  %1809 = vmatprep.subr.mxu0 %v1523
  %1810 = vmatpush1.msra.mxu0 %v1522
  %1811 = vmatprep.subr.mxu0 %v1515
  %1812 = vmatpush1.msra.mxu0 %v1514
  %1813 = vmatprep.subr.mxu0 %v1507
  %1814 = vmatpush1.msra.mxu0 %v1506
  %1815 = vmatprep.subr.mxu0 %v1499
  %1816 = vmatpush1.msra.mxu0 %v1498
  %1817 = vmatprep.subr.mxu0 %v1491
  %1818 = vmatpush1.msra.mxu0 %v1490
  %1819 = vmatprep.subr.mxu0 %v1483
  %1820 = vmatpush1.msra.mxu0 %v1482
  %1821 = vmatprep.subr.mxu0 %v1475
  %1822 = vmatpush1.msra.mxu0 %v1474
  %1823 = vmatprep.subr.mxu0 %v1467
  %1824 = vmatpush1.msra.mxu0 %v1466
  %1825 = vmatprep.subr.mxu0 %v1459
  %1826 = vmatpush1.msra.mxu0 %v1458
  %1827 = vmatprep.subr.mxu0 %v1451
  %1828 = vmatpush1.msra.mxu0 %v1450
  %1829 = vmatprep.subr.mxu0 %v1443
  %1830 = vmatpush1.msra.mxu0 %v1442
  %1831 = vmatprep.subr.mxu0 %v1435
  %1832 = vmatpush1.msra.mxu0 %v1434
  %1833 = vmatprep.subr.mxu0 %v1427
  %1834 = vmatpush1.msra.mxu0 %v1426
  %1835 = vmatprep.subr.mxu0 0.0
  %1836 = vmatpush2.msra.mxu0 0.0
  %1837 = vmatprep.subr.mxu0 0.0
  %1838 = vmatpush2.msra.mxu0 0.0
  %1839 = vmatprep.subr.mxu0 0.0
  %1840 = vmatpush2.msra.mxu0 0.0
  %1841 = vmatprep.subr.mxu0 0.0
  %1842 = vmatpush2.msra.mxu0 0.0
  %1843 = vmatprep.subr.mxu0 0.0
  %1844 = vmatpush2.msra.mxu0 0.0
  %1845 = vmatprep.subr.mxu0 0.0
  %1846 = vmatpush2.msra.mxu0 0.0
  %1847 = vmatprep.subr.mxu0 0.0
  %1848 = vmatpush2.msra.mxu0 0.0
  %1849 = vmatprep.subr.mxu0 0.0
  %1850 = vmatpush2.msra.mxu0 0.0
  %1851 = vmatprep.subr.mxu0 0.0
  %1852 = vmatpush2.msra.mxu0 0.0
  %1853 = vmatprep.subr.mxu0 0.0
  %1854 = vmatpush2.msra.mxu0 0.0
  %1855 = vmatprep.subr.mxu0 0.0
  %1856 = vmatpush2.msra.mxu0 0.0
  %1857 = vmatprep.subr.mxu0 0.0
  %1858 = vmatpush2.msra.mxu0 0.0
  %1859 = vmatprep.subr.mxu0 0.0
  %1860 = vmatpush2.msra.mxu0 0.0
  %1861 = vmatprep.subr.mxu0 0.0
  %1862 = vmatpush2.msra.mxu0 0.0
  %1863 = vmatprep.subr.mxu0 0.0
  %1864 = vmatpush2.msra.mxu0 0.0
  %1865 = vmatprep.subr.mxu0 0.0
  %1866 = vmatpush2.msra.mxu0 0.0
  %1867 = vmatprep.mubr.f32.mxu0 0.0
  %1868 = vmatmul.mubr.f32.gmra.mxu0 %v1419
  %v1869 = vpop.f32.mrf.mxu0
  %v1870 = vadd.f32 %v1577, %v1869
  %v1871 = vpop.f32.mrf.mxu0
  %v1872 = vadd.f32 %v1581, %v1871
  %1873 = vdwg.mxu0
  %v1882 = vcombine.low %v1657, %v1659
  %v1883 = vcombine.low %v1728, %v1730
  %v1885 = vunpack.c.l.s4 1983009808
  %v1886 = vunpack.c.0.s8 %v1885
  %v1887 = vlaneseq
  %v1888 = vshrl.u32 %v1887, 7
  %v1889 = vsub.s32 %v1886, %v1888
  %v1890 = vrot.slane %v1882, %v1889
  %v1892 = vunpack.c.l.s4 1983009808
  %v1893 = vunpack.c.0.s8 %v1892
  %v1894 = vlaneseq
  %v1895 = vshrl.u32 %v1894, 7
  %v1896 = vsub.s32 %v1893, %v1895
  %v1897 = vrot.slane %v1883, %v1896
  %v1898 = vcombine.low %v1890, %v1897
  %v1899 = vcombine.low %v1799, %v1801
  %v1900 = vcombine.low %v1870, %v1872
  %v1902 = vunpack.c.l.s4 1983009808
  %v1903 = vunpack.c.0.s8 %v1902
  %v1904 = vlaneseq
  %v1905 = vshrl.u32 %v1904, 7
  %v1906 = vsub.s32 %v1903, %v1905
  %v1907 = vrot.slane %v1899, %v1906
  %v1909 = vunpack.c.l.s4 1983009808
  %v1910 = vunpack.c.0.s8 %v1909
  %v1911 = vlaneseq
  %v1912 = vshrl.u32 %v1911, 7
  %v1913 = vsub.s32 %v1910, %v1912
  %v1914 = vrot.slane %v1900, %v1913
  %v1915 = vcombine.low %v1907, %v1914
  %1918 = vst [vmem:[%s20] sm:$0xff] %v1898
  %1919 = vst [vmem:[%s20 + $0x8] sm:$0xff] %v1915
  // Predicated region
  $region78: #{pepper_net_multi_core3_forward.3} parent=0 // pred_check
    _
  $region79: #{pepper_net_multi_core3_forward.3} parent=0 // pred_check_branch
    %1921 = sbr.rel (0) target = $region81
  $region80: #{pepper_net_multi_core3_forward.3} parent=0 // pred_region
    _
  $region81: #{pepper_net_multi_core3_forward.3} parent=0 // pred_fallthru
    _
  // Predicated region
  $region82: #{pepper_net_multi_core3_forward.3} parent=0 // pred_check
    _
  $region83: #{pepper_net_multi_core3_forward.3} parent=0 // pred_check_branch
    %1923 = sbr.rel (0) target = $region85
  $region84: #{pepper_net_multi_core3_forward.3} parent=0 // pred_region
    _
  $region85: #{pepper_net_multi_core3_forward.3} parent=0 // pred_fallthru
    _
  // Predicated region
  $region86: #{pepper_net_multi_core3_forward.3} parent=0 // pred_check
    _
  $region87: #{pepper_net_multi_core3_forward.3} parent=0 // pred_check_branch
    %1925 = sbr.rel (0) target = $region89
  $region88: #{pepper_net_multi_core3_forward.3} parent=0 // pred_region
    _
  $region89: #{pepper_net_multi_core3_forward.3} parent=0 // pred_fallthru
    _
  // Predicated region
  $region90: #{pepper_net_multi_core3_forward.3} parent=0 // pred_check
    _
  $region91: #{pepper_net_multi_core3_forward.3} parent=0 // pred_check_branch
    %1927 = sbr.rel (0) target = $region93
  $region92: #{pepper_net_multi_core3_forward.3} parent=0 // pred_region
    _
  $region93: #{pepper_net_multi_core3_forward.3} parent=0 // pred_fallthru
    _

</llo_original>
